<compile_context>
chip_gen: v7x
topology: tpu7x:2x2x1
jax: 0.10.0
libtpu: 0.0.40
codegen_flags: <defaults>
</compile_context>

<pallas_src>
import functools
import math

import jax
import jax.numpy as jnp
from jax.experimental import pallas as pl
from jax.experimental.pallas import tpu as pltpu

LANE = 128
BN_EPS = 1e-5


def _round_up(x, m):
    return ((x + m - 1) // m) * m


# ---------------------------------------------------------------------------
# Pass 1: depthwise 3x3 conv (halo built in VMEM) + per-image BN statistics
# ---------------------------------------------------------------------------
def _dwconv_stats_kernel(x_ref, wdw_ref, dw_ref, sum_ref, sq_ref, xp_ref):
    # x_ref  : (1, H, W, Cp) bf16  image tile (no spatial padding in HBM)
    # wdw_ref: (3, 3, Cp)    f32   depthwise weights, VMEM-resident (1 copy)
    # dw_ref : (1, H, W, Cp) bf16  conv output
    # sum/sq : (1, 1, Cp)    f32   per-image BN partials ("parallel" batch axis)
    # xp_ref : (H+2, Wp, Cp) f32   scratch: zero halo, image at column offset 8
    _, H, W, cp = dw_ref.shape

    # Build the zero-padded image once in VMEM; the image is stored at a
    # sublane-aligned column offset (8), so the fill store needs no realign.
    xp_ref[...] = jnp.zeros(xp_ref.shape, jnp.float32)
    xp_ref[pl.ds(1, H), pl.ds(8, W), :] = x_ref[0].astype(jnp.float32)

    wdw = wdw_ref[...]                       # (3, 3, Cp) f32
    xp = xp_ref[...]                         # (H+2, Wp, Cp) f32

    # Three column-shifted views built ONCE per image (kw=1 is aligned at
    # offset 8; kw=0 / kw=2 cost one sublane realign each) instead of per tap.
    # TODO(synk): pltpu.roll along W would move these two shifts onto the XLU.
    cols = [xp[:, 7 + kw: 7 + kw + W, :] for kw in range(3)]

    # 9-tap depthwise conv; row (H) shifts index the untiled dim => free.
    acc = None
    for kh in range(3):
        row = (cols[0][kh:kh + H] * wdw[kh, 0]
               + cols[1][kh:kh + H] * wdw[kh, 1]
               + cols[2][kh:kh + H] * wdw[kh, 2])
        acc = row if acc is None else acc + row

    dw = acc.astype(jnp.bfloat16)
    dw_ref[0] = dw

    # BN statistics of the same bf16-rounded tensor pass 2 will normalize.
    f = dw.astype(jnp.float32)
    sum_ref[...] = jnp.sum(f, axis=(0, 1)).reshape(1, 1, cp)
    sq_ref[...] = jnp.sum(f * f, axis=(0, 1)).reshape(1, 1, cp)


# ---------------------------------------------------------------------------
# Pass 2: (BN folded into w1) expand -> GELU -> project -> + residual
# ---------------------------------------------------------------------------
def _mlp_kernel(dw_ref, xres_ref, w1_ref, b1_ref, w2_ref, o_ref, *,
                e_tiles, e_tile):
    # dw_ref : (TR, Cp) bf16   conv output tile (BN folded into w1/b1)
    # xres_ref:(TR, Cp) bf16   residual tile
    # w1_ref : (Cp, Ep) bf16   BN-scaled expand weight (VMEM resident)
    # b1_ref : (1, Ep)  f32    BN bias folded through w1 (VMEM resident)
    # w2_ref : (Ep, Cp) bf16   project weight (VMEM resident)
    # o_ref  : (TR, Cp) f32
    a = dw_ref[...]
    y = xres_ref[...].astype(jnp.float32)          # start from the residual
    for e in range(e_tiles):                       # Ep tiled: bounded (TR, ET)
        lo = e * e_tile
        h = jnp.dot(a, w1_ref[:, lo:lo + e_tile],
                    preferred_element_type=jnp.float32) + b1_ref[:, lo:lo + e_tile]
        # tanh-approx GELU: transcendental goes to the EUP slot instead of a
        # long erf polynomial on the VALU (tiny numeric delta vs. exact GELU).
        h = 0.5 * h * (1.0 + jnp.tanh(0.7978845608028654
                                      * (h + 0.044715 * (h * h * h))))
        y = y + jnp.dot(h.astype(jnp.bfloat16), w2_ref[lo:lo + e_tile, :],
                        preferred_element_type=jnp.float32)
    o_ref[...] = y


# ---------------------------------------------------------------------------
# Tiling / VMEM sizing helpers
# ---------------------------------------------------------------------------
def _pick_row_tile(rows, target):
    """Largest divisor of `rows` <= target, preferring multiples of 256
    (v6e/v7x 2x256x256 MXU), falling back to multiples of 8."""
    if rows <= target:
        return rows
    for step in (256, 8):
        t = (target // step) * step
        while t >= step:
            if rows % t == 0:
                return t
            t -= step
    return rows


def _pick_e_tile(ep, target=512):
    t = min(ep, (target // 128) * 128)
    while t >= 128:
        if ep % t == 0:
            return t
        t -= 128
    return ep


def _vmem_budget_bytes():
    """~3/4 of physical VMEM (64 MiB on v7x, 128 MiB on v5e/v6e)."""
    try:
        cap = int(getattr(pltpu.get_tpu_info(), "vmem_capacity_bytes", 0))
    except Exception:
        cap = 0
    if cap <= 0:
        cap = 64 << 20            # most conservative generation (v7x)
    return (cap * 3) // 4


def bottleneck_forward(x_nchw, w_dw, gamma, beta, w1, w2, *, row_tile=1024):
    """ConvNeXt BottleNeck forward.  x_nchw: (N, C, H, W) f32 -> (N, C, H, W)."""
    # TODO(synk): keep the model NHWC end-to-end so the NCHW<->NHWC transposes
    # and channel pad don't run as separate HBM round trips.
    x = jnp.transpose(x_nchw, (0, 2, 3, 1)).astype(jnp.float32)    # NHWC
    N, H, W, C = x.shape
    E = w1.shape[1]
    Cp = _round_up(C, LANE)
    Ep = _round_up(E, LANE)
    R = N * H * W

    # Single HBM copy of the activation: lane-dense channel pad, bf16, shared
    # by pass 1 (conv input) and pass 2 (residual).  Padding is inert (zero
    # weights / gamma / beta on padded channels) and is sliced off at the end.
    x_p = jnp.pad(x, ((0, 0), (0, 0), (0, 0), (0, Cp - C))).astype(jnp.bfloat16)
    wdw_p = jnp.pad(w_dw.astype(jnp.float32), ((0, 0), (0, 0), (0, Cp - C)))
    gamma_p = jnp.pad(gamma.astype(jnp.float32), (0, Cp - C)).reshape(1, Cp)
    beta_p = jnp.pad(beta.astype(jnp.float32), (0, Cp - C)).reshape(1, Cp)

    # ---- pass 1: depthwise conv + per-image BN statistics ------------------
    Wp = _round_up(W + 9, 8)                 # scratch width (halo + aligned img)
    img_bytes = H * W * Cp
    est1 = (2 * img_bytes * 2                # x tile bf16, double-buffered
            + 2 * img_bytes * 2              # dw tile bf16, double-buffered
            + (H + 2) * Wp * Cp * 4          # padded scratch (f32)
            + 3 * (H + 2) * W * Cp * 4       # three column views (f32)
            + img_bytes * 4)                 # conv accumulator (f32)
    vmem1 = None if est1 < (12 << 20) else int(
        min(max(2 * est1, 32 << 20), _vmem_budget_bytes()))
    # TODO(synk): tile pass 1 over H rows (overlapping halo) instead of
    # whole-image blocks for very large spatial extents.

    dw, ch_sum, ch_sq = pl.pallas_call(
        _dwconv_stats_kernel,
        grid=(N,),
        in_specs=[
            pl.BlockSpec((1, H, W, Cp), lambda n: (n, 0, 0, 0)),
            pl.BlockSpec(memory_space=pltpu.MemorySpace.VMEM),   # weights, 1 copy
        ],
        out_specs=[
            pl.BlockSpec((1, H, W, Cp), lambda n: (n, 0, 0, 0)),
            pl.BlockSpec((1, 1, Cp), lambda n: (n, 0, 0)),
            pl.BlockSpec((1, 1, Cp), lambda n: (n, 0, 0)),
        ],
        out_shape=[
            jax.ShapeDtypeStruct((N, H, W, Cp), jnp.bfloat16),
            jax.ShapeDtypeStruct((N, 1, Cp), jnp.float32),
            jax.ShapeDtypeStruct((N, 1, Cp), jnp.float32),
        ],
        scratch_shapes=[pltpu.VMEM((H + 2, Wp, Cp), jnp.float32)],
        compiler_params=pltpu.CompilerParams(
            dimension_semantics=("parallel",),
            vmem_limit_bytes=vmem1),
    )(x_p, wdw_p)

    # ---- glue: fold train-mode BN (batch stats) + affine into w1 -----------
    # TODO(synk): PyTorch train-mode BatchNorm also updates running stats;
    # that module state is not produced here (forward output is unaffected).
    cnt = float(R)
    mean = jnp.sum(ch_sum, axis=0) / cnt                    # (1, Cp)
    var = jnp.maximum(jnp.sum(ch_sq, axis=0) / cnt - mean * mean, 0.0)
    inv_std = jax.lax.rsqrt(var + BN_EPS)
    scale = gamma_p * inv_std                               # (1, Cp)
    bias = beta_p - mean * scale                            # (1, Cp)
    w1f = jnp.pad(w1.astype(jnp.float32), ((0, Cp - C), (0, Ep - E)))
    w1_scaled = (scale.reshape(Cp, 1) * w1f).astype(jnp.bfloat16)   # (Cp, Ep)
    b1 = (bias @ w1f).astype(jnp.float32)                           # (1, Ep)
    w2_p = jnp.pad(w2, ((0, Ep - E), (0, Cp - C))).astype(jnp.bfloat16)

    # ---- pass 2: expand -> GELU -> project -> +residual (row tiles) --------
    TR = _pick_row_tile(R, row_tile)
    ET = _pick_e_tile(Ep)

    def pass2_bytes(tr):
        return (2 * tr * Cp * 2              # dw tile bf16, double-buffered
                + 2 * tr * Cp * 2            # residual tile bf16, double-buffered
                + 2 * tr * Cp * 4            # output tile f32, double-buffered
                + Cp * Ep * 2 + Ep * 4 + Ep * Cp * 2   # resident weights (1 copy)
                + tr * ET * (4 + 2)          # h (f32) + bf16 copy fed to MXU
                + tr * Cp * 4)               # y accumulator

    vmem2 = None
    if pass2_bytes(TR) >= (12 << 20):
        budget = _vmem_budget_bytes()
        while pass2_bytes(TR) > budget and TR >= 512 and R % (TR // 2) == 0:
            TR //= 2                         # shrink to fit the generation's VMEM
        vmem2 = int(min(max(2 * pass2_bytes(TR), 32 << 20), budget))

    dw_flat = dw.reshape(R, Cp)
    x_flat = x_p.reshape(R, Cp)              # bf16 residual (small-C regime)

    out_flat = pl.pallas_call(
        functools.partial(_mlp_kernel, e_tiles=Ep // ET, e_tile=ET),
        grid=(R // TR,),
        in_specs=[
            pl.BlockSpec((TR, Cp), lambda r: (r, 0)),
            pl.BlockSpec((TR, Cp), lambda r: (r, 0)),
            pl.BlockSpec(memory_space=pltpu.MemorySpace.VMEM),   # w1 (1 copy)
            pl.BlockSpec(memory_space=pltpu.MemorySpace.VMEM),   # b1 (1 copy)
            pl.BlockSpec(memory_space=pltpu.MemorySpace.VMEM),   # w2 (1 copy)
        ],
        out_specs=pl.BlockSpec((TR, Cp), lambda r: (r, 0)),
        out_shape=jax.ShapeDtypeStruct((R, Cp), jnp.float32),
        compiler_params=pltpu.CompilerParams(
            dimension_semantics=("parallel",),
            vmem_limit_bytes=vmem2),
    )(dw_flat, x_flat, w1_scaled, b1, w2_p)

    out = out_flat.reshape(N, H, W, Cp)[..., :C]
    return jnp.transpose(out, (0, 3, 1, 2))                 # back to NCHW


def init_params(key, dim, expansion=4):
    e = dim * expansion
    k1, k2, k3, k4, k5 = jax.random.split(key, 5)
    # depthwise conv weight: PyTorch (dim,1,3,3) -> kernel layout (3,3,dim)
    w_dw = 0.3 * jax.random.normal(k1, (3, 3, dim), jnp.float32)
    gamma = 1.0 + 0.1 * jax.random.normal(k2, (dim,), jnp.float32)
    beta = 0.1 * jax.random.normal(k3, (dim,), jnp.float32)
    # 1x1 convs: PyTorch (out,in,1,1) -> matmul layout (in,out)
    w1 = 0.3 * jax.random.normal(k4, (dim, e), jnp.float32)   # dim -> 4*dim
    w2 = 0.3 * jax.random.normal(k5, (e, dim), jnp.float32)   # 4*dim -> dim
    return w_dw, gamma, beta, w1, w2


def _reference_forward(x_nchw, w_dw, gamma, beta, w1, w2):
    """Pure-jnp f32 reference with the PyTorch module's semantics (exact GELU)."""
    x = jnp.transpose(x_nchw, (0, 2, 3, 1)).astype(jnp.float32)
    N, H, W, C = x.shape
    xp = jnp.pad(x, ((0, 0), (1, 1), (1, 1), (0, 0)))
    dw = jnp.zeros((N, H, W, C), jnp.float32)
    for kh in range(3):
        for kw in range(3):
            dw = dw + xp[:, kh:kh + H, kw:kw + W, :] * w_dw[kh, kw, :]
    f = dw.reshape(-1, C)
    mean = jnp.mean(f, axis=0)
    var = jnp.mean((f - mean) ** 2, axis=0)
    bn = (f - mean) * jax.lax.rsqrt(var + BN_EPS) * gamma + beta
    h = bn @ w1
    h = 0.5 * h * (1.0 + jax.lax.erf(h * (1.0 / math.sqrt(2.0))))
    y = h @ w2
    out = (y + x.reshape(-1, C)).reshape(N, H, W, C)
    return jnp.transpose(out, (0, 3, 1, 2))


if __name__ == "__main__":
    key = jax.random.PRNGKey(0)
    kx, kp = jax.random.split(key)

    N, C, H, W = 2, 4, 16, 16                  # dim = 4, expanded = 16
    x = jax.random.normal(kx, (N, C, H, W), jnp.float32)
    params = init_params(kp, C)

    # row_tile=128 exercises a multi-step "parallel" grid at this toy size.
    out = bottleneck_forward(x, *params, row_tile=128)
    jax.block_until_ready(out)
    assert out.shape == (N, C, H, W)

    ref = _reference_forward(x, *params)
    err = float(jnp.max(jnp.abs(out - ref)))
    # bf16 activations / weights / residual + tanh-approx GELU => loose tolerance
    assert err < 0.2, f"max abs err vs f32 reference: {err}"

    print("KERNEL_OK")
</pallas_src>

<mosaic_0001>
module attributes {stable_mosaic.version = 11 : i64} {
  func.func @_dwconv_stats_kernel(%arg0: i32, %arg1: memref<1x16x16x128xbf16, #tpu.memory_space<vmem>>, %arg2: memref<3x3x128xf32, #tpu.memory_space<vmem>>, %arg3: memref<1x16x16x128xbf16, #tpu.memory_space<vmem>>, %arg4: memref<1x1x128xf32, #tpu.memory_space<vmem>>, %arg5: memref<1x1x128xf32, #tpu.memory_space<vmem>>, %arg6: memref<18x32x128xf32, #tpu.memory_space<vmem>>) attributes {dimension_semantics = [#tpu.dimension_semantics<parallel>], iteration_bounds = array<i64: 2>, scalar_prefetch = 0 : i64, scratch_operands = 1 : i64, tpu.core_type = #tpu.core_type<tc>, window_params = [{transform_indices = @transform_0, window_bounds = array<i64: 1, 16, 16, 128>}, {pipeline_mode = #tpu.pipeline_mode<synchronous>, transform_indices = @transform_1, window_bounds = array<i64: 3, 3, 128>}, {transform_indices = @transform_2, window_bounds = array<i64: 1, 16, 16, 128>}, {transform_indices = @transform_3, window_bounds = array<i64: 1, 1, 128>}, {transform_indices = @transform_4, window_bounds = array<i64: 1, 1, 128>}]} {
    %cst = arith.constant 0.000000e+00 : f32
    %0 = vector.broadcast %cst : f32 to vector<18x32x128xf32>
    %c0 = arith.constant 0 : index
    %c0_0 = arith.constant 0 : index
    %c0_1 = arith.constant 0 : index
    %1 = vector.load %arg6[%c0, %c0_0, %c0_1] : memref<18x32x128xf32, #tpu.memory_space<vmem>>, vector<18x32x128xf32>
    tpu.vector_store %arg6[%c0, %c0_0, %c0_1], %0 {strides = array<i32>} : memref<18x32x128xf32, #tpu.memory_space<vmem>>, vector<18x32x128xf32>,
    %c0_2 = arith.constant 0 : index
    %c0_3 = arith.constant 0 : index
    %c0_4 = arith.constant 0 : index
    %c0_5 = arith.constant 0 : index
    %2 = vector.load %arg1[%c0_2, %c0_3, %c0_4, %c0_5] : memref<1x16x16x128xbf16, #tpu.memory_space<vmem>>, vector<1x16x16x128xbf16>
    %3 = vector.shape_cast %2 : vector<1x16x16x128xbf16> to vector<16x16x128xbf16>
    %4 = arith.extf %3 : vector<16x16x128xbf16> to vector<16x16x128xf32>
    %c1 = arith.constant 1 : index
    %c8 = arith.constant 8 : index
    %c0_6 = arith.constant 0 : index
    %5 = vector.load %arg6[%c1, %c8, %c0_6] : memref<18x32x128xf32, #tpu.memory_space<vmem>>, vector<16x16x128xf32>
    tpu.vector_store %arg6[%c1, %c8, %c0_6], %4 {strides = array<i32>} : memref<18x32x128xf32, #tpu.memory_space<vmem>>, vector<16x16x128xf32>,
    %c0_7 = arith.constant 0 : index
    %c0_8 = arith.constant 0 : index
    %c0_9 = arith.constant 0 : index
    %6 = vector.load %arg2[%c0_7, %c0_8, %c0_9] : memref<3x3x128xf32, #tpu.memory_space<vmem>>, vector<3x3x128xf32>
    %c0_10 = arith.constant 0 : index
    %c0_11 = arith.constant 0 : index
    %c0_12 = arith.constant 0 : index
    %7 = vector.load %arg6[%c0_10, %c0_11, %c0_12] : memref<18x32x128xf32, #tpu.memory_space<vmem>>, vector<18x32x128xf32>
    %8 = vector.extract_strided_slice %7 {offsets = [0, 7, 0], sizes = [18, 16, 128], strides = [1, 1, 1]} : vector<18x32x128xf32> to vector<18x16x128xf32>
    %9 = vector.extract_strided_slice %7 {offsets = [0, 8, 0], sizes = [18, 16, 128], strides = [1, 1, 1]} : vector<18x32x128xf32> to vector<18x16x128xf32>
    %10 = vector.extract_strided_slice %7 {offsets = [0, 9, 0], sizes = [18, 16, 128], strides = [1, 1, 1]} : vector<18x32x128xf32> to vector<18x16x128xf32>
    %11 = vector.extract_strided_slice %8 {offsets = [0, 0, 0], sizes = [16, 16, 128], strides = [1, 1, 1]} : vector<18x16x128xf32> to vector<16x16x128xf32>
    %12 = vector.extract_strided_slice %6 {offsets = [0, 0, 0], sizes = [1, 1, 128], strides = [1, 1, 1]} : vector<3x3x128xf32> to vector<1x1x128xf32>
    %13 = vector.shape_cast %12 : vector<1x1x128xf32> to vector<128xf32>
    %14 = vector.shape_cast %13 : vector<128xf32> to vector<1x1x128xf32>
    %15 = vector.broadcast %14 : vector<1x1x128xf32> to vector<16x16x128xf32>
    %16 = arith.mulf %11, %15 : vector<16x16x128xf32>
    %17 = vector.extract_strided_slice %9 {offsets = [0, 0, 0], sizes = [16, 16, 128], strides = [1, 1, 1]} : vector<18x16x128xf32> to vector<16x16x128xf32>
    %18 = vector.extract_strided_slice %6 {offsets = [0, 1, 0], sizes = [1, 1, 128], strides = [1, 1, 1]} : vector<3x3x128xf32> to vector<1x1x128xf32>
    %19 = vector.shape_cast %18 : vector<1x1x128xf32> to vector<128xf32>
    %20 = vector.shape_cast %19 : vector<128xf32> to vector<1x1x128xf32>
    %21 = vector.broadcast %20 : vector<1x1x128xf32> to vector<16x16x128xf32>
    %22 = arith.mulf %17, %21 : vector<16x16x128xf32>
    %23 = arith.addf %16, %22 : vector<16x16x128xf32>
    %24 = vector.extract_strided_slice %10 {offsets = [0, 0, 0], sizes = [16, 16, 128], strides = [1, 1, 1]} : vector<18x16x128xf32> to vector<16x16x128xf32>
    %25 = vector.extract_strided_slice %6 {offsets = [0, 2, 0], sizes = [1, 1, 128], strides = [1, 1, 1]} : vector<3x3x128xf32> to vector<1x1x128xf32>
    %26 = vector.shape_cast %25 : vector<1x1x128xf32> to vector<128xf32>
    %27 = vector.shape_cast %26 : vector<128xf32> to vector<1x1x128xf32>
    %28 = vector.broadcast %27 : vector<1x1x128xf32> to vector<16x16x128xf32>
    %29 = arith.mulf %24, %28 : vector<16x16x128xf32>
    %30 = arith.addf %23, %29 : vector<16x16x128xf32>
    %31 = vector.extract_strided_slice %8 {offsets = [1, 0, 0], sizes = [16, 16, 128], strides = [1, 1, 1]} : vector<18x16x128xf32> to vector<16x16x128xf32>
    %32 = vector.extract_strided_slice %6 {offsets = [1, 0, 0], sizes = [1, 1, 128], strides = [1, 1, 1]} : vector<3x3x128xf32> to vector<1x1x128xf32>
    %33 = vector.shape_cast %32 : vector<1x1x128xf32> to vector<128xf32>
    %34 = vector.shape_cast %33 : vector<128xf32> to vector<1x1x128xf32>
    %35 = vector.broadcast %34 : vector<1x1x128xf32> to vector<16x16x128xf32>
    %36 = arith.mulf %31, %35 : vector<16x16x128xf32>
    %37 = vector.extract_strided_slice %9 {offsets = [1, 0, 0], sizes = [16, 16, 128], strides = [1, 1, 1]} : vector<18x16x128xf32> to vector<16x16x128xf32>
    %38 = vector.extract_strided_slice %6 {offsets = [1, 1, 0], sizes = [1, 1, 128], strides = [1, 1, 1]} : vector<3x3x128xf32> to vector<1x1x128xf32>
    %39 = vector.shape_cast %38 : vector<1x1x128xf32> to vector<128xf32>
    %40 = vector.shape_cast %39 : vector<128xf32> to vector<1x1x128xf32>
    %41 = vector.broadcast %40 : vector<1x1x128xf32> to vector<16x16x128xf32>
    %42 = arith.mulf %37, %41 : vector<16x16x128xf32>
    %43 = arith.addf %36, %42 : vector<16x16x128xf32>
    %44 = vector.extract_strided_slice %10 {offsets = [1, 0, 0], sizes = [16, 16, 128], strides = [1, 1, 1]} : vector<18x16x128xf32> to vector<16x16x128xf32>
    %45 = vector.extract_strided_slice %6 {offsets = [1, 2, 0], sizes = [1, 1, 128], strides = [1, 1, 1]} : vector<3x3x128xf32> to vector<1x1x128xf32>
    %46 = vector.shape_cast %45 : vector<1x1x128xf32> to vector<128xf32>
    %47 = vector.shape_cast %46 : vector<128xf32> to vector<1x1x128xf32>
    %48 = vector.broadcast %47 : vector<1x1x128xf32> to vector<16x16x128xf32>
    %49 = arith.mulf %44, %48 : vector<16x16x128xf32>
    %50 = arith.addf %43, %49 : vector<16x16x128xf32>
    %51 = arith.addf %30, %50 : vector<16x16x128xf32>
    %52 = vector.extract_strided_slice %8 {offsets = [2, 0, 0], sizes = [16, 16, 128], strides = [1, 1, 1]} : vector<18x16x128xf32> to vector<16x16x128xf32>
    %53 = vector.extract_strided_slice %6 {offsets = [2, 0, 0], sizes = [1, 1, 128], strides = [1, 1, 1]} : vector<3x3x128xf32> to vector<1x1x128xf32>
    %54 = vector.shape_cast %53 : vector<1x1x128xf32> to vector<128xf32>
    %55 = vector.shape_cast %54 : vector<128xf32> to vector<1x1x128xf32>
    %56 = vector.broadcast %55 : vector<1x1x128xf32> to vector<16x16x128xf32>
    %57 = arith.mulf %52, %56 : vector<16x16x128xf32>
    %58 = vector.extract_strided_slice %9 {offsets = [2, 0, 0], sizes = [16, 16, 128], strides = [1, 1, 1]} : vector<18x16x128xf32> to vector<16x16x128xf32>
    %59 = vector.extract_strided_slice %6 {offsets = [2, 1, 0], sizes = [1, 1, 128], strides = [1, 1, 1]} : vector<3x3x128xf32> to vector<1x1x128xf32>
    %60 = vector.shape_cast %59 : vector<1x1x128xf32> to vector<128xf32>
    %61 = vector.shape_cast %60 : vector<128xf32> to vector<1x1x128xf32>
    %62 = vector.broadcast %61 : vector<1x1x128xf32> to vector<16x16x128xf32>
    %63 = arith.mulf %58, %62 : vector<16x16x128xf32>
    %64 = arith.addf %57, %63 : vector<16x16x128xf32>
    %65 = vector.extract_strided_slice %10 {offsets = [2, 0, 0], sizes = [16, 16, 128], strides = [1, 1, 1]} : vector<18x16x128xf32> to vector<16x16x128xf32>
    %66 = vector.extract_strided_slice %6 {offsets = [2, 2, 0], sizes = [1, 1, 128], strides = [1, 1, 1]} : vector<3x3x128xf32> to vector<1x1x128xf32>
    %67 = vector.shape_cast %66 : vector<1x1x128xf32> to vector<128xf32>
    %68 = vector.shape_cast %67 : vector<128xf32> to vector<1x1x128xf32>
    %69 = vector.broadcast %68 : vector<1x1x128xf32> to vector<16x16x128xf32>
    %70 = arith.mulf %65, %69 : vector<16x16x128xf32>
    %71 = arith.addf %64, %70 : vector<16x16x128xf32>
    %72 = arith.addf %51, %71 : vector<16x16x128xf32>
    %73 = arith.truncf %72 : vector<16x16x128xf32> to vector<16x16x128xbf16>
    %c0_13 = arith.constant 0 : index
    %c0_14 = arith.constant 0 : index
    %c0_15 = arith.constant 0 : index
    %c0_16 = arith.constant 0 : index
    %74 = vector.load %arg3[%c0_13, %c0_14, %c0_15, %c0_16] : memref<1x16x16x128xbf16, #tpu.memory_space<vmem>>, vector<1x16x16x128xbf16>
    %75 = vector.shape_cast %74 : vector<1x16x16x128xbf16> to vector<16x16x128xbf16>
    %76 = vector.shape_cast %73 : vector<16x16x128xbf16> to vector<1x16x16x128xbf16>
    tpu.vector_store %arg3[%c0_13, %c0_14, %c0_15, %c0_16], %76 {strides = array<i32>} : memref<1x16x16x128xbf16, #tpu.memory_space<vmem>>, vector<1x16x16x128xbf16>,
    %77 = arith.extf %73 : vector<16x16x128xbf16> to vector<16x16x128xf32>
    %cst_17 = arith.constant dense<0.000000e+00> : vector<128xf32>
    %78 = vector.multi_reduction <add>, %77, %cst_17 [0, 1] : vector<16x16x128xf32> to vector<128xf32>
    %79 = vector.shape_cast %78 : vector<128xf32> to vector<1x1x128xf32>
    %c0_18 = arith.constant 0 : index
    %c0_19 = arith.constant 0 : index
    %c0_20 = arith.constant 0 : index
    %80 = vector.load %arg4[%c0_18, %c0_19, %c0_20] : memref<1x1x128xf32, #tpu.memory_space<vmem>>, vector<1x1x128xf32>
    tpu.vector_store %arg4[%c0_18, %c0_19, %c0_20], %79 {strides = array<i32>} : memref<1x1x128xf32, #tpu.memory_space<vmem>>, vector<1x1x128xf32>,
    %81 = arith.mulf %77, %77 : vector<16x16x128xf32>
    %cst_21 = arith.constant dense<0.000000e+00> : vector<128xf32>
    %82 = vector.multi_reduction <add>, %81, %cst_21 [0, 1] : vector<16x16x128xf32> to vector<128xf32>
    %83 = vector.shape_cast %82 : vector<128xf32> to vector<1x1x128xf32>
    %c0_22 = arith.constant 0 : index
    %c0_23 = arith.constant 0 : index
    %c0_24 = arith.constant 0 : index
    %84 = vector.load %arg5[%c0_22, %c0_23, %c0_24] : memref<1x1x128xf32, #tpu.memory_space<vmem>>, vector<1x1x128xf32>
    tpu.vector_store %arg5[%c0_22, %c0_23, %c0_24], %83 {strides = array<i32>} : memref<1x1x128xf32, #tpu.memory_space<vmem>>, vector<1x1x128xf32>,
    return
  }
  func.func @transform_0(%arg0: i32) -> (i32, i32, i32, i32) {
    %c0_i32 = arith.constant 0 : i32
    %c0_i32_0 = arith.constant 0 : i32
    %c0_i32_1 = arith.constant 0 : i32
    %c0_i32_2 = arith.constant 0 : i32
    return %arg0, %c0_i32, %c0_i32_0, %c0_i32_1 : i32, i32, i32, i32
  }
  func.func @transform_1(%arg0: i32) -> (i32, i32, i32) {
    %c0_i32 = arith.constant 0 : i32
    %c0_i32_0 = arith.constant 0 : i32
    %c0_i32_1 = arith.constant 0 : i32
    %c0_i32_2 = arith.constant 0 : i32
    return %c0_i32, %c0_i32_0, %c0_i32_1 : i32, i32, i32
  }
  func.func @transform_2(%arg0: i32) -> (i32, i32, i32, i32) {
    %c0_i32 = arith.constant 0 : i32
    %c0_i32_0 = arith.constant 0 : i32
    %c0_i32_1 = arith.constant 0 : i32
    %c0_i32_2 = arith.constant 0 : i32
    return %arg0, %c0_i32, %c0_i32_0, %c0_i32_1 : i32, i32, i32, i32
  }
  func.func @transform_3(%arg0: i32) -> (i32, i32, i32) {
    %c0_i32 = arith.constant 0 : i32
    %c0_i32_0 = arith.constant 0 : i32
    %c0_i32_1 = arith.constant 0 : i32
    return %arg0, %c0_i32, %c0_i32_0 : i32, i32, i32
  }
  func.func @transform_4(%arg0: i32) -> (i32, i32, i32) {
    %c0_i32 = arith.constant 0 : i32
    %c0_i32_0 = arith.constant 0 : i32
    %c0_i32_1 = arith.constant 0 : i32
    return %arg0, %c0_i32, %c0_i32_0 : i32, i32, i32
  }
}

</mosaic_0001>

<llo_original>
// kernel: tpu_custom_call.1
$region0: #{tpu_custom_call.1}
  #allocation0 [shape = 'u32[]', space=smem, size = 0x4, offset = 0x4, fixed_abs, tag = 'smem constant byte address 0x4 - core index']
  #allocation1 [shape = 'u32[144,128]{1,0:T(1,128)}', space=vmem, size = 0x12000, scoped, tag = 'internal scratch']
  #allocation2 [shape = 'f32[18,32,128]{2,1,0:T(8,128)}', space=vmem, size = 0x48000, scoped, tag = 'scratch operand']
  %s0 = inlined_call_operand.hbm [shape: bf16[2,16,16,128], index: 0, kind: input, shape index: {}]
  %s1 = inlined_call_operand.hbm [shape: f32[3,3,128], index: 1, kind: input, shape index: {}]
  %s2 = inlined_call_operand.hbm [shape: bf16[2,16,16,128], index: 2, kind: output, shape index: {0}]
  %s3 = inlined_call_operand.hbm [shape: f32[2,1,128], index: 3, kind: output, shape index: {1}]
  %s4 = inlined_call_operand.hbm [shape: f32[2,1,128], index: 4, kind: output, shape index: {2}]
  %5 = xla_tuple %s2, %s3, %s4
  %s6 = sld [smem:[#allocation0]]
  $region65: #{tpu_custom_call.1} parent=0
    _
  %s8 = ssub.s32 1, %s6
  %s9 = scalar_select 0, %s8, %s6
  $region1: #{tpu_custom_call.1} parent=0
    #allocation3 [shape = 'u8[131072]{0}', space=vmem, size = 0x20000, scoped, tag = 'input window, operand 0']
    #allocation4 [shape = 's32[2]{0}', space=sflag, size = 0x8, scoped, tag = 'scoped memory for tpu_custom_call.1']
    #allocation5 [shape = 's32[2]{0}', space=sflag, size = 0x8, scoped, tag = 'scoped memory for tpu_custom_call.1']
    #allocation6 [shape = 'u8[6144]{0}', space=vmem, size = 0x1800, scoped, tag = 'input window, operand 1, single buffered']
    #allocation7 [shape = 's32[1]{0}', space=sflag, size = 0x4, scoped, tag = 'scoped memory for tpu_custom_call.1']
    #allocation8 [shape = 'u8[131072]{0}', space=vmem, size = 0x20000, scoped, tag = 'output window, operand 0']
    #allocation9 [shape = 'u8[1024]{0}', space=vmem, size = 0x400, scoped, tag = 'output window, operand 1']
    #allocation10 [shape = 's32[2]{0}', space=sflag, size = 0x8, scoped, tag = 'scoped memory for tpu_custom_call.1']
    #allocation11 [shape = 'u8[1024]{0}', space=vmem, size = 0x400, scoped, tag = 'output window, operand 2']
    %10 = vsyncpa [#allocation4], 0
    %s11 = scalar_lea.sflag [#allocation4], 1
    %12 = vsyncpa %s11, 0
    %13 = vsyncpa [#allocation7], 0
    %14 = vsyncpa [#allocation5], 0
    %s15 = scalar_lea.sflag [#allocation5], 1
    %16 = vsyncpa %s15, 0
    %17 = vsyncpa [#allocation10], 0
    %s18 = scalar_lea.sflag [#allocation10], 1
    %19 = vsyncpa %s18, 0
    loop: start=0, step=1, limit=4
    $region2: #{tpu_custom_call.1} parent=1 // loop_pre_header
      _
    $region3: #{tpu_custom_call.1} parent=1 // loop_header
      %s21 = sphi 0, %s25
      %p22 = scmp.ge.s32.totalorder %s21, 4
      %s31 = sphi 0, %s33
      %s34 = sphi 0, %s31
      %s35 = sphi 0, %s34
      %s51 = sphi 0, %s35
      %s55 = sphi 0, %s55
      %s57 = sphi 0, %s55
      %s58 = sphi 0, %s57
      %s72 = sphi 0, %s58
      %s78 = sphi 0, %s80
      %s81 = sphi 0, %s78
      %s82 = sphi 0, %s81
      %s98 = sphi 0, %s82
      %s104 = sphi 0, %s106
      %s107 = sphi 0, %s104
      %s108 = sphi 0, %s107
      %s124 = sphi 0, %s108
      %s130 = sphi 0, %s132
      %s133 = sphi 0, %s130
      %s134 = sphi 0, %s133
      %s150 = sphi 0, %s134
    $region4: #{tpu_custom_call.1} parent=1 // loop_header_branch
      %24 = sbr.rel (%p22) target = $region8
    $region5: #{tpu_custom_call.1} parent=1 // loop_body
      %s26 = ssub.s32 %s21, 1
      %s27 = ssub.s32 %s21, 2
      %s28 = sadd.s32 %s21, 1
      %s29 = ssub.s32 %s21, %s28
      %p30 = scmp.eq.s32.totalorder %s29, 0
      %s32 = sadd.s32 %s31, 1
      %s33 = scalar_select %p30, %s31, %s32
      %p36 = pneg %p30
      %p37 = scmp.eq.s32.totalorder %s21, 1
      %p38 = por %p36, %p37
      %p39 = scmp.ne.s32.totalorder %s31, %s34
      %p40 = scmp.eq.s32.totalorder %s21, 0
      %p41 = por %p39, %p40
      %p42 = scmp.ne.s32.totalorder %s31, %s34
      %p43 = scmp.eq.s32.totalorder %s26, 1
      %p44 = por %p42, %p43
      %p45 = scmp.ne.s32.totalorder %s34, %s35
      %p46 = scmp.eq.s32.totalorder %s26, 0
      %p47 = por %p45, %p46
      %p48 = scmp.ne.s32.totalorder %s34, %s35
      %p49 = scmp.eq.s32.totalorder %s27, 1
      %p50 = por %p48, %p49
      %p52 = scmp.ne.s32.totalorder %s35, %s51
      %p53 = scmp.eq.s32.totalorder %s27, 0
      %p54 = por %p52, %p53
      %s56 = sadd.s32 %s55, 1
      %p59 = scmp.eq.s32.totalorder %s21, 1
      %p60 = scmp.ne.s32.totalorder %s55, %s57
      %p61 = scmp.eq.s32.totalorder %s21, 0
      %p62 = por %p60, %p61
      %p63 = scmp.ne.s32.totalorder %s55, %s57
      %p64 = scmp.eq.s32.totalorder %s26, 1
      %p65 = por %p63, %p64
      %p66 = scmp.ne.s32.totalorder %s57, %s58
      %p67 = scmp.eq.s32.totalorder %s26, 0
      %p68 = por %p66, %p67
      %p69 = scmp.ne.s32.totalorder %s57, %s58
      %p70 = scmp.eq.s32.totalorder %s27, 1
      %p71 = por %p69, %p70
      %p73 = scmp.ne.s32.totalorder %s58, %s72
      %p74 = scmp.eq.s32.totalorder %s27, 0
      %p75 = por %p73, %p74
      %s76 = ssub.s32 %s21, %s28
      %p77 = scmp.eq.s32.totalorder %s76, 0
      %s79 = sadd.s32 %s78, 1
      %s80 = scalar_select %p77, %s78, %s79
      %p83 = pneg %p77
      %p84 = scmp.eq.s32.totalorder %s21, 1
      %p85 = por %p83, %p84
      %p86 = scmp.ne.s32.totalorder %s78, %s81
      %p87 = scmp.eq.s32.totalorder %s21, 0
      %p88 = por %p86, %p87
      %p89 = scmp.ne.s32.totalorder %s78, %s81
      %p90 = scmp.eq.s32.totalorder %s26, 1
      %p91 = por %p89, %p90
      %p92 = scmp.ne.s32.totalorder %s81, %s82
      %p93 = scmp.eq.s32.totalorder %s26, 0
      %p94 = por %p92, %p93
      %p95 = scmp.ne.s32.totalorder %s81, %s82
      %p96 = scmp.eq.s32.totalorder %s27, 1
      %p97 = por %p95, %p96
      %p99 = scmp.ne.s32.totalorder %s82, %s98
      %p100 = scmp.eq.s32.totalorder %s27, 0
      %p101 = por %p99, %p100
      %s102 = ssub.s32 %s21, %s28
      %p103 = scmp.eq.s32.totalorder %s102, 0
      %s105 = sadd.s32 %s104, 1
      %s106 = scalar_select %p103, %s104, %s105
      %p109 = pneg %p103
      %p110 = scmp.eq.s32.totalorder %s21, 1
      %p111 = por %p109, %p110
      %p112 = scmp.ne.s32.totalorder %s104, %s107
      %p113 = scmp.eq.s32.totalorder %s21, 0
      %p114 = por %p112, %p113
      %p115 = scmp.ne.s32.totalorder %s104, %s107
      %p116 = scmp.eq.s32.totalorder %s26, 1
      %p117 = por %p115, %p116
      %p118 = scmp.ne.s32.totalorder %s107, %s108
      %p119 = scmp.eq.s32.totalorder %s26, 0
      %p120 = por %p118, %p119
      %p121 = scmp.ne.s32.totalorder %s107, %s108
      %p122 = scmp.eq.s32.totalorder %s27, 1
      %p123 = por %p121, %p122
      %p125 = scmp.ne.s32.totalorder %s108, %s124
      %p126 = scmp.eq.s32.totalorder %s27, 0
      %p127 = por %p125, %p126
      %s128 = ssub.s32 %s21, %s28
      %p129 = scmp.eq.s32.totalorder %s128, 0
      %s131 = sadd.s32 %s130, 1
      %s132 = scalar_select %p129, %s130, %s131
      %p135 = pneg %p129
      %p136 = scmp.eq.s32.totalorder %s21, 1
      %p137 = por %p135, %p136
      %p138 = scmp.ne.s32.totalorder %s130, %s133
      %p139 = scmp.eq.s32.totalorder %s21, 0
      %p140 = por %p138, %p139
      %p141 = scmp.ne.s32.totalorder %s130, %s133
      %p142 = scmp.eq.s32.totalorder %s26, 1
      %p143 = por %p141, %p142
      %p144 = scmp.ne.s32.totalorder %s133, %s134
      %p145 = scmp.eq.s32.totalorder %s26, 0
      %p146 = por %p144, %p145
      %p147 = scmp.ne.s32.totalorder %s133, %s134
      %p148 = scmp.eq.s32.totalorder %s27, 1
      %p149 = por %p147, %p148
      %p151 = scmp.ne.s32.totalorder %s134, %s150
      %p152 = scmp.eq.s32.totalorder %s27, 0
      %p153 = por %p151, %p152
      %p154 = scmp.le.s32.totalorder 1, %s21
      %p155 = scmp.lt.s32.totalorder %s21, 3
      %p156 = pnand %p154, %p155
      %p157 = pneg %p156
      // Predicated region
      $region9: #{tpu_custom_call.1} parent=5 // pred_check
        _
      $region10: #{tpu_custom_call.1} parent=5 // pred_check_branch
        %159 = sbr.rel (%p156) target = $region12
      $region11: #{tpu_custom_call.1} parent=5 // pred_region
        %s160 = ssub.s32 %s21, 1
        // Predicated region
        $region13: #{tpu_custom_call.1} parent=11 // pred_check
          %p161 = pneg %p68
        $region14: #{tpu_custom_call.1} parent=11 // pred_check_branch
          %163 = sbr.rel (%p161) target = $region16
        $region15: #{tpu_custom_call.1} parent=11 // pred_region
          %s165 = ssub.s32 192, 192
          %166 = vsyncadd [#allocation7], %s165
          %s167 = sshll.u32 [#allocation6], 4
          %s168 = int_to_ptr.vmem [resolvable:$true] %s167
          %173 = dma.hbm_to_vmem [thread:$0]  %s1, 192, %s168, [#allocation7], 64, 64, 4
        $region16: #{tpu_custom_call.1} parent=11 // pred_fallthru
          _
      $region12: #{tpu_custom_call.1} parent=5 // pred_fallthru
        _
      %p174 = scmp.lt.s32.totalorder %s21, 2
      // Predicated region
      $region17: #{tpu_custom_call.1} parent=5 // pred_check
        %p175 = pneg %p174
      $region18: #{tpu_custom_call.1} parent=5 // pred_check_branch
        %177 = sbr.rel (%p175) target = $region20
      $region19: #{tpu_custom_call.1} parent=5 // pred_region
        // Predicated region
        $region21: #{tpu_custom_call.1} parent=19 // pred_check
          %p178 = pneg %p41
        $region22: #{tpu_custom_call.1} parent=19 // pred_check_branch
          %180 = sbr.rel (%p178) target = $region24
        $region23: #{tpu_custom_call.1} parent=19 // pred_region
          %s181 = sand.u32 %s31, 1
          %s182 = scalar_lea.sflag [#allocation4], %s181
          %s183 = sand.u32 %s31, 1
          %s184 = smul.addr %s183, 128
          %s185 = scalar_lea.vmem [#allocation3], %s184
          %s187 = ssub.s32 2048, 2048
          %188 = vsyncadd %s182, %s187
          %s189 = smul.addr %s21, 32
          %s190 = smul.addr %s189, 64
          %s191 = scalar_lea.hbm %s0, %s190
          %s192 = sshll.u32 %s185, 4
          %s193 = int_to_ptr.vmem [resolvable:$true] %s192
          %198 = dma.hbm_to_vmem [thread:$0]  %s191, 2048, %s193, %s182, 64, 64, 4
        $region24: #{tpu_custom_call.1} parent=19 // pred_fallthru
          _
      $region20: #{tpu_custom_call.1} parent=5 // pred_fallthru
        _
      %p199 = scmp.le.s32.totalorder 1, %s21
      %p200 = scmp.lt.s32.totalorder %s21, 3
      %p201 = pnand %p199, %p200
      %p202 = pneg %p201
      // Predicated region
      $region25: #{tpu_custom_call.1} parent=5 // pred_check
        _
      $region26: #{tpu_custom_call.1} parent=5 // pred_check_branch
        %204 = sbr.rel (%p201) target = $region28
      $region27: #{tpu_custom_call.1} parent=5 // pred_region
        %s205 = ssub.s32 %s21, 1
        %s206 = sand.u32 %s34, 1
        %s207 = scalar_lea.sflag [#allocation4], %s206
        %s208 = sand.u32 %s34, 1
        %s209 = smul.addr %s208, 128
        %s210 = scalar_lea.vmem [#allocation3], %s209
        // Predicated region
        $region29: #{tpu_custom_call.1} parent=27 // pred_check
          %p211 = pneg %p47
        $region30: #{tpu_custom_call.1} parent=27 // pred_check_branch
          %213 = sbr.rel (%p211) target = $region32
        $region31: #{tpu_custom_call.1} parent=27 // pred_region
          %214 = dma.done %s207, 2048
        $region32: #{tpu_custom_call.1} parent=27 // pred_fallthru
          _
        // Predicated region
        $region33: #{tpu_custom_call.1} parent=27 // pred_check
          %p215 = pneg %p68
        $region34: #{tpu_custom_call.1} parent=27 // pred_check_branch
          %217 = sbr.rel (%p215) target = $region36
        $region35: #{tpu_custom_call.1} parent=27 // pred_region
          %218 = dma.done [#allocation7], 192
        $region36: #{tpu_custom_call.1} parent=27 // pred_fallthru
          _
        %s219 = sand.u32 %s34, 1
        %s220 = scalar_lea.sflag [#allocation4], %s219
        %s221 = sand.u32 %s34, 1
        %s222 = smul.addr %s221, 128
        %s223 = scalar_lea.vmem [#allocation3], %s222
        %p224 = pneg %p47
        %p225 = pneg %p44
        %p226 = pneg %p68
        %p227 = pneg %p65
        %p228 = pneg %p94
        %p229 = pneg %p91
        %s230 = sand.u32 %s81, 1
        %s231 = scalar_lea.sflag [#allocation5], %s230
        %s232 = sand.u32 %s81, 1
        %s233 = smul.addr %s232, 128
        %s234 = scalar_lea.vmem [#allocation8], %s233
        %p235 = pneg %p120
        %p236 = pneg %p117
        %s237 = sand.u32 %s26, 1
        %s238 = scalar_lea.sflag [#allocation10], %s237
        %s239 = sand.u32 %s107, 1
        %s240 = scalar_lea.vmem [#allocation9], %s239
        %p241 = pneg %p146
        %p242 = pneg %p143
        %s243 = sand.u32 %s26, 1
        %s244 = scalar_lea.sflag [#allocation10], %s243
        %s245 = sand.u32 %s133, 1
        %s246 = scalar_lea.vmem [#allocation11], %s245
        %247 = vst [vmem:[#allocation2] sm:$0xff] 0.0
        %248 = vst [vmem:[#allocation2 + $0x8] sm:$0xff] 0.0
        %249 = vst [vmem:[#allocation2 + $0x10] sm:$0xff] 0.0
        %250 = vst [vmem:[#allocation2 + $0x18] sm:$0xff] 0.0
        %251 = vst [vmem:[#allocation2 + $0x20] sm:$0xff] 0.0
        %252 = vst [vmem:[#allocation2 + $0x28] sm:$0xff] 0.0
        %253 = vst [vmem:[#allocation2 + $0x30] sm:$0xff] 0.0
        %254 = vst [vmem:[#allocation2 + $0x38] sm:$0xff] 0.0
        %255 = vst [vmem:[#allocation2 + $0x40] sm:$0xff] 0.0
        %256 = vst [vmem:[#allocation2 + $0x48] sm:$0xff] 0.0
        %257 = vst [vmem:[#allocation2 + $0x50] sm:$0xff] 0.0
        %258 = vst [vmem:[#allocation2 + $0x58] sm:$0xff] 0.0
        %259 = vst [vmem:[#allocation2 + $0x60] sm:$0xff] 0.0
        %260 = vst [vmem:[#allocation2 + $0x68] sm:$0xff] 0.0
        %261 = vst [vmem:[#allocation2 + $0x70] sm:$0xff] 0.0
        %262 = vst [vmem:[#allocation2 + $0x78] sm:$0xff] 0.0
        %263 = vst [vmem:[#allocation2 + $0x80] sm:$0xff] 0.0
        %264 = vst [vmem:[#allocation2 + $0x88] sm:$0xff] 0.0
        %265 = vst [vmem:[#allocation2 + $0x90] sm:$0xff] 0.0
        %266 = vst [vmem:[#allocation2 + $0x98] sm:$0xff] 0.0
        %267 = vst [vmem:[#allocation2 + $0xa0] sm:$0xff] 0.0
        %268 = vst [vmem:[#allocation2 + $0xa8] sm:$0xff] 0.0
        %269 = vst [vmem:[#allocation2 + $0xb0] sm:$0xff] 0.0
        %270 = vst [vmem:[#allocation2 + $0xb8] sm:$0xff] 0.0
        %271 = vst [vmem:[#allocation2 + $0xc0] sm:$0xff] 0.0
        %272 = vst [vmem:[#allocation2 + $0xc8] sm:$0xff] 0.0
        %273 = vst [vmem:[#allocation2 + $0xd0] sm:$0xff] 0.0
        %274 = vst [vmem:[#allocation2 + $0xd8] sm:$0xff] 0.0
        %275 = vst [vmem:[#allocation2 + $0xe0] sm:$0xff] 0.0
        %276 = vst [vmem:[#allocation2 + $0xe8] sm:$0xff] 0.0
        %277 = vst [vmem:[#allocation2 + $0xf0] sm:$0xff] 0.0
        %278 = vst [vmem:[#allocation2 + $0xf8] sm:$0xff] 0.0
        %279 = vst [vmem:[#allocation2 + $0x100] sm:$0xff] 0.0
        %280 = vst [vmem:[#allocation2 + $0x108] sm:$0xff] 0.0
        %281 = vst [vmem:[#allocation2 + $0x110] sm:$0xff] 0.0
        %282 = vst [vmem:[#allocation2 + $0x118] sm:$0xff] 0.0
        %283 = vst [vmem:[#allocation2 + $0x120] sm:$0xff] 0.0
        %284 = vst [vmem:[#allocation2 + $0x128] sm:$0xff] 0.0
        %285 = vst [vmem:[#allocation2 + $0x130] sm:$0xff] 0.0
        %286 = vst [vmem:[#allocation2 + $0x138] sm:$0xff] 0.0
        %287 = vst [vmem:[#allocation2 + $0x140] sm:$0xff] 0.0
        %288 = vst [vmem:[#allocation2 + $0x148] sm:$0xff] 0.0
        %289 = vst [vmem:[#allocation2 + $0x150] sm:$0xff] 0.0
        %290 = vst [vmem:[#allocation2 + $0x158] sm:$0xff] 0.0
        %291 = vst [vmem:[#allocation2 + $0x160] sm:$0xff] 0.0
        %292 = vst [vmem:[#allocation2 + $0x168] sm:$0xff] 0.0
        %293 = vst [vmem:[#allocation2 + $0x170] sm:$0xff] 0.0
        %294 = vst [vmem:[#allocation2 + $0x178] sm:$0xff] 0.0
        %295 = vst [vmem:[#allocation2 + $0x180] sm:$0xff] 0.0
        %296 = vst [vmem:[#allocation2 + $0x188] sm:$0xff] 0.0
        %297 = vst [vmem:[#allocation2 + $0x190] sm:$0xff] 0.0
        %298 = vst [vmem:[#allocation2 + $0x198] sm:$0xff] 0.0
        %299 = vst [vmem:[#allocation2 + $0x1a0] sm:$0xff] 0.0
        %300 = vst [vmem:[#allocation2 + $0x1a8] sm:$0xff] 0.0
        %301 = vst [vmem:[#allocation2 + $0x1b0] sm:$0xff] 0.0
        %302 = vst [vmem:[#allocation2 + $0x1b8] sm:$0xff] 0.0
        %303 = vst [vmem:[#allocation2 + $0x1c0] sm:$0xff] 0.0
        %304 = vst [vmem:[#allocation2 + $0x1c8] sm:$0xff] 0.0
        %305 = vst [vmem:[#allocation2 + $0x1d0] sm:$0xff] 0.0
        %306 = vst [vmem:[#allocation2 + $0x1d8] sm:$0xff] 0.0
        %307 = vst [vmem:[#allocation2 + $0x1e0] sm:$0xff] 0.0
        %308 = vst [vmem:[#allocation2 + $0x1e8] sm:$0xff] 0.0
        %309 = vst [vmem:[#allocation2 + $0x1f0] sm:$0xff] 0.0
        %310 = vst [vmem:[#allocation2 + $0x1f8] sm:$0xff] 0.0
        %311 = vst [vmem:[#allocation2 + $0x200] sm:$0xff] 0.0
        %312 = vst [vmem:[#allocation2 + $0x208] sm:$0xff] 0.0
        %313 = vst [vmem:[#allocation2 + $0x210] sm:$0xff] 0.0
        %314 = vst [vmem:[#allocation2 + $0x218] sm:$0xff] 0.0
        %315 = vst [vmem:[#allocation2 + $0x220] sm:$0xff] 0.0
        %316 = vst [vmem:[#allocation2 + $0x228] sm:$0xff] 0.0
        %317 = vst [vmem:[#allocation2 + $0x230] sm:$0xff] 0.0
        %318 = vst [vmem:[#allocation2 + $0x238] sm:$0xff] 0.0
        %v319 = vld [vmem:[%s210] sm:$0xf]
        %v320 = vld [vmem:[%s210 + $0x4] sm:$0xf]
        %v321 = vld [vmem:[%s210 + $0x8] sm:$0xf]
        %v322 = vld [vmem:[%s210 + $0xc] sm:$0xf]
        %v323 = vld [vmem:[%s210 + $0x10] sm:$0xf]
        %v324 = vld [vmem:[%s210 + $0x14] sm:$0xf]
        %v325 = vld [vmem:[%s210 + $0x18] sm:$0xf]
        %v326 = vld [vmem:[%s210 + $0x1c] sm:$0xf]
        %v327 = vld [vmem:[%s210 + $0x20] sm:$0xf]
        %v328 = vld [vmem:[%s210 + $0x24] sm:$0xf]
        %v329 = vld [vmem:[%s210 + $0x28] sm:$0xf]
        %v330 = vld [vmem:[%s210 + $0x2c] sm:$0xf]
        %v331 = vld [vmem:[%s210 + $0x30] sm:$0xf]
        %v332 = vld [vmem:[%s210 + $0x34] sm:$0xf]
        %v333 = vld [vmem:[%s210 + $0x38] sm:$0xf]
        %v334 = vld [vmem:[%s210 + $0x3c] sm:$0xf]
        %v335 = vld [vmem:[%s210 + $0x40] sm:$0xf]
        %v336 = vld [vmem:[%s210 + $0x44] sm:$0xf]
        %v337 = vld [vmem:[%s210 + $0x48] sm:$0xf]
        %v338 = vld [vmem:[%s210 + $0x4c] sm:$0xf]
        %v339 = vld [vmem:[%s210 + $0x50] sm:$0xf]
        %v340 = vld [vmem:[%s210 + $0x54] sm:$0xf]
        %v341 = vld [vmem:[%s210 + $0x58] sm:$0xf]
        %v342 = vld [vmem:[%s210 + $0x5c] sm:$0xf]
        %v343 = vld [vmem:[%s210 + $0x60] sm:$0xf]
        %v344 = vld [vmem:[%s210 + $0x64] sm:$0xf]
        %v345 = vld [vmem:[%s210 + $0x68] sm:$0xf]
        %v346 = vld [vmem:[%s210 + $0x6c] sm:$0xf]
        %v347 = vld [vmem:[%s210 + $0x70] sm:$0xf]
        %v348 = vld [vmem:[%s210 + $0x74] sm:$0xf]
        %v349 = vld [vmem:[%s210 + $0x78] sm:$0xf]
        %v350 = vld [vmem:[%s210 + $0x7c] sm:$0xf]
        %v351 = vunpack.c.l.bf16 %v319
        %v352 = vunpack.c.l.bf16 %v320
        %v353 = vunpack.c.l.bf16 %v321
        %v354 = vunpack.c.l.bf16 %v322
        %v355 = vunpack.c.l.bf16 %v323
        %v356 = vunpack.c.l.bf16 %v324
        %v357 = vunpack.c.l.bf16 %v325
        %v358 = vunpack.c.l.bf16 %v326
        %v359 = vunpack.c.l.bf16 %v327
        %v360 = vunpack.c.l.bf16 %v328
        %v361 = vunpack.c.l.bf16 %v329
        %v362 = vunpack.c.l.bf16 %v330
        %v363 = vunpack.c.l.bf16 %v331
        %v364 = vunpack.c.l.bf16 %v332
        %v365 = vunpack.c.l.bf16 %v333
        %v366 = vunpack.c.l.bf16 %v334
        %v367 = vunpack.c.l.bf16 %v335
        %v368 = vunpack.c.l.bf16 %v336
        %v369 = vunpack.c.l.bf16 %v337
        %v370 = vunpack.c.l.bf16 %v338
        %v371 = vunpack.c.l.bf16 %v339
        %v372 = vunpack.c.l.bf16 %v340
        %v373 = vunpack.c.l.bf16 %v341
        %v374 = vunpack.c.l.bf16 %v342
        %v375 = vunpack.c.l.bf16 %v343
        %v376 = vunpack.c.l.bf16 %v344
        %v377 = vunpack.c.l.bf16 %v345
        %v378 = vunpack.c.l.bf16 %v346
        %v379 = vunpack.c.l.bf16 %v347
        %v380 = vunpack.c.l.bf16 %v348
        %v381 = vunpack.c.l.bf16 %v349
        %v382 = vunpack.c.l.bf16 %v350
        %s383 = scalar_lea.vmem [#allocation2], 32
        %384 = vst [vmem:[%s383 + $0x8] sm:$0xff] %v351
        %385 = vst [vmem:[%s383 + $0x10] sm:$0xff] %v352
        %386 = vst [vmem:[%s383 + $0x28] sm:$0xff] %v353
        %387 = vst [vmem:[%s383 + $0x30] sm:$0xff] %v354
        %388 = vst [vmem:[%s383 + $0x48] sm:$0xff] %v355
        %389 = vst [vmem:[%s383 + $0x50] sm:$0xff] %v356
        %390 = vst [vmem:[%s383 + $0x68] sm:$0xff] %v357
        %391 = vst [vmem:[%s383 + $0x70] sm:$0xff] %v358
        %392 = vst [vmem:[%s383 + $0x88] sm:$0xff] %v359
        %393 = vst [vmem:[%s383 + $0x90] sm:$0xff] %v360
        %394 = vst [vmem:[%s383 + $0xa8] sm:$0xff] %v361
        %395 = vst [vmem:[%s383 + $0xb0] sm:$0xff] %v362
        %396 = vst [vmem:[%s383 + $0xc8] sm:$0xff] %v363
        %397 = vst [vmem:[%s383 + $0xd0] sm:$0xff] %v364
        %398 = vst [vmem:[%s383 + $0xe8] sm:$0xff] %v365
        %399 = vst [vmem:[%s383 + $0xf0] sm:$0xff] %v366
        %400 = vst [vmem:[%s383 + $0x108] sm:$0xff] %v367
        %401 = vst [vmem:[%s383 + $0x110] sm:$0xff] %v368
        %402 = vst [vmem:[%s383 + $0x128] sm:$0xff] %v369
        %403 = vst [vmem:[%s383 + $0x130] sm:$0xff] %v370
        %404 = vst [vmem:[%s383 + $0x148] sm:$0xff] %v371
        %405 = vst [vmem:[%s383 + $0x150] sm:$0xff] %v372
        %406 = vst [vmem:[%s383 + $0x168] sm:$0xff] %v373
        %407 = vst [vmem:[%s383 + $0x170] sm:$0xff] %v374
        %408 = vst [vmem:[%s383 + $0x188] sm:$0xff] %v375
        %409 = vst [vmem:[%s383 + $0x190] sm:$0xff] %v376
        %410 = vst [vmem:[%s383 + $0x1a8] sm:$0xff] %v377
        %411 = vst [vmem:[%s383 + $0x1b0] sm:$0xff] %v378
        %412 = vst [vmem:[%s383 + $0x1c8] sm:$0xff] %v379
        %413 = vst [vmem:[%s383 + $0x1d0] sm:$0xff] %v380
        %414 = vst [vmem:[%s383 + $0x1e8] sm:$0xff] %v381
        %415 = vst [vmem:[%s383 + $0x1f0] sm:$0xff] %v382
        %v416 = vld [vmem:[#allocation6] sm:$0x7]
        %v417 = vld [vmem:[#allocation6 + $0x4] sm:$0x7]
        %v418 = vld [vmem:[#allocation6 + $0x8] sm:$0x7]
        %v419 = vld [vmem:[#allocation2] sm:$0xff]
        %v420 = vld [vmem:[#allocation2 + $0x8] sm:$0xff]
        %v421 = vld [vmem:[#allocation2 + $0x10] sm:$0xff]
        %v422 = vld [vmem:[#allocation2 + $0x18] sm:$0xff]
        %v423 = vld [vmem:[#allocation2 + $0x20] sm:$0xff]
        %v424 = vld [vmem:[#allocation2 + $0x28] sm:$0xff]
        %v425 = vld [vmem:[#allocation2 + $0x30] sm:$0xff]
        %v426 = vld [vmem:[#allocation2 + $0x38] sm:$0xff]
        %v427 = vld [vmem:[#allocation2 + $0x40] sm:$0xff]
        %v428 = vld [vmem:[#allocation2 + $0x48] sm:$0xff]
        %v429 = vld [vmem:[#allocation2 + $0x50] sm:$0xff]
        %v430 = vld [vmem:[#allocation2 + $0x58] sm:$0xff]
        %v431 = vld [vmem:[#allocation2 + $0x60] sm:$0xff]
        %v432 = vld [vmem:[#allocation2 + $0x68] sm:$0xff]
        %v433 = vld [vmem:[#allocation2 + $0x70] sm:$0xff]
        %v434 = vld [vmem:[#allocation2 + $0x78] sm:$0xff]
        %v435 = vld [vmem:[#allocation2 + $0x80] sm:$0xff]
        %v436 = vld [vmem:[#allocation2 + $0x88] sm:$0xff]
        %v437 = vld [vmem:[#allocation2 + $0x90] sm:$0xff]
        %v438 = vld [vmem:[#allocation2 + $0x98] sm:$0xff]
        %v439 = vld [vmem:[#allocation2 + $0xa0] sm:$0xff]
        %v440 = vld [vmem:[#allocation2 + $0xa8] sm:$0xff]
        %v441 = vld [vmem:[#allocation2 + $0xb0] sm:$0xff]
        %v442 = vld [vmem:[#allocation2 + $0xb8] sm:$0xff]
        %v443 = vld [vmem:[#allocation2 + $0xc0] sm:$0xff]
        %v444 = vld [vmem:[#allocation2 + $0xc8] sm:$0xff]
        %v445 = vld [vmem:[#allocation2 + $0xd0] sm:$0xff]
        %v446 = vld [vmem:[#allocation2 + $0xd8] sm:$0xff]
        %v447 = vld [vmem:[#allocation2 + $0xe0] sm:$0xff]
        %v448 = vld [vmem:[#allocation2 + $0xe8] sm:$0xff]
        %v449 = vld [vmem:[#allocation2 + $0xf0] sm:$0xff]
        %v450 = vld [vmem:[#allocation2 + $0xf8] sm:$0xff]
        %v451 = vld [vmem:[#allocation2 + $0x100] sm:$0xff]
        %v452 = vld [vmem:[#allocation2 + $0x108] sm:$0xff]
        %v453 = vld [vmem:[#allocation2 + $0x110] sm:$0xff]
        %v454 = vld [vmem:[#allocation2 + $0x118] sm:$0xff]
        %v455 = vld [vmem:[#allocation2 + $0x120] sm:$0xff]
        %v456 = vld [vmem:[#allocation2 + $0x128] sm:$0xff]
        %v457 = vld [vmem:[#allocation2 + $0x130] sm:$0xff]
        %v458 = vld [vmem:[#allocation2 + $0x138] sm:$0xff]
        %v459 = vld [vmem:[#allocation2 + $0x140] sm:$0xff]
        %v460 = vld [vmem:[#allocation2 + $0x148] sm:$0xff]
        %v461 = vld [vmem:[#allocation2 + $0x150] sm:$0xff]
        %v462 = vld [vmem:[#allocation2 + $0x158] sm:$0xff]
        %v463 = vld [vmem:[#allocation2 + $0x160] sm:$0xff]
        %v464 = vld [vmem:[#allocation2 + $0x168] sm:$0xff]
        %v465 = vld [vmem:[#allocation2 + $0x170] sm:$0xff]
        %v466 = vld [vmem:[#allocation2 + $0x178] sm:$0xff]
        %v467 = vld [vmem:[#allocation2 + $0x180] sm:$0xff]
        %v468 = vld [vmem:[#allocation2 + $0x188] sm:$0xff]
        %v469 = vld [vmem:[#allocation2 + $0x190] sm:$0xff]
        %v470 = vld [vmem:[#allocation2 + $0x198] sm:$0xff]
        %v471 = vld [vmem:[#allocation2 + $0x1a0] sm:$0xff]
        %v472 = vld [vmem:[#allocation2 + $0x1a8] sm:$0xff]
        %v473 = vld [vmem:[#allocation2 + $0x1b0] sm:$0xff]
        %v474 = vld [vmem:[#allocation2 + $0x1b8] sm:$0xff]
        %v475 = vld [vmem:[#allocation2 + $0x1c0] sm:$0xff]
        %v476 = vld [vmem:[#allocation2 + $0x1c8] sm:$0xff]
        %v477 = vld [vmem:[#allocation2 + $0x1d0] sm:$0xff]
        %v478 = vld [vmem:[#allocation2 + $0x1d8] sm:$0xff]
        %v479 = vld [vmem:[#allocation2 + $0x1e0] sm:$0xff]
        %v480 = vld [vmem:[#allocation2 + $0x1e8] sm:$0xff]
        %v481 = vld [vmem:[#allocation2 + $0x1f0] sm:$0xff]
        %v482 = vld [vmem:[#allocation2 + $0x1f8] sm:$0xff]
        %v483 = vld [vmem:[#allocation2 + $0x200] sm:$0xff]
        %v484 = vld [vmem:[#allocation2 + $0x208] sm:$0xff]
        %v485 = vld [vmem:[#allocation2 + $0x210] sm:$0xff]
        %v486 = vld [vmem:[#allocation2 + $0x218] sm:$0xff]
        %v487 = vld [vmem:[#allocation2 + $0x220] sm:$0xff]
        %v488 = vld [vmem:[#allocation2 + $0x228] sm:$0xff]
        %v489 = vld [vmem:[#allocation2 + $0x230] sm:$0xff]
        %v490 = vld [vmem:[#allocation2 + $0x238] sm:$0xff]
        %v491 = vlaneseq
        %v492 = vshrl.u32 %v491, 7
        %v493 = vsub.s32 0, %v492
        %v494 = vrot.slane %v416, %v493
        %v495 = vmul.f32 %v419, %v494
        %v496 = vmul.f32 %v420, %v494
        %v497 = vmul.f32 %v421, %v494
        %v498 = vmul.f32 %v423, %v494
        %v499 = vmul.f32 %v424, %v494
        %v500 = vmul.f32 %v425, %v494
        %v501 = vmul.f32 %v427, %v494
        %v502 = vmul.f32 %v428, %v494
        %v503 = vmul.f32 %v429, %v494
        %v504 = vmul.f32 %v431, %v494
        %v505 = vmul.f32 %v432, %v494
        %v506 = vmul.f32 %v433, %v494
        %v507 = vmul.f32 %v435, %v494
        %v508 = vmul.f32 %v436, %v494
        %v509 = vmul.f32 %v437, %v494
        %v510 = vmul.f32 %v439, %v494
        %v511 = vmul.f32 %v440, %v494
        %v512 = vmul.f32 %v441, %v494
        %v513 = vmul.f32 %v443, %v494
        %v514 = vmul.f32 %v444, %v494
        %v515 = vmul.f32 %v445, %v494
        %v516 = vmul.f32 %v447, %v494
        %v517 = vmul.f32 %v448, %v494
        %v518 = vmul.f32 %v449, %v494
        %v519 = vmul.f32 %v451, %v494
        %v520 = vmul.f32 %v452, %v494
        %v521 = vmul.f32 %v453, %v494
        %v522 = vmul.f32 %v455, %v494
        %v523 = vmul.f32 %v456, %v494
        %v524 = vmul.f32 %v457, %v494
        %v525 = vmul.f32 %v459, %v494
        %v526 = vmul.f32 %v460, %v494
        %v527 = vmul.f32 %v461, %v494
        %v528 = vmul.f32 %v463, %v494
        %v529 = vmul.f32 %v464, %v494
        %v530 = vmul.f32 %v465, %v494
        %v531 = vmul.f32 %v467, %v494
        %v532 = vmul.f32 %v468, %v494
        %v533 = vmul.f32 %v469, %v494
        %v534 = vmul.f32 %v471, %v494
        %v535 = vmul.f32 %v472, %v494
        %v536 = vmul.f32 %v473, %v494
        %v537 = vmul.f32 %v475, %v494
        %v538 = vmul.f32 %v476, %v494
        %v539 = vmul.f32 %v477, %v494
        %v540 = vmul.f32 %v479, %v494
        %v541 = vmul.f32 %v480, %v494
        %v542 = vmul.f32 %v481, %v494
        %v543 = vlaneseq
        %v544 = vshrl.u32 %v543, 7
        %v545 = vsub.s32 1, %v544
        %v546 = vrot.slane %v416, %v545
        %v547 = vmul.f32 %v420, %v546
        %v548 = vmul.f32 %v421, %v546
        %v549 = vmul.f32 %v424, %v546
        %v550 = vmul.f32 %v425, %v546
        %v551 = vmul.f32 %v428, %v546
        %v552 = vmul.f32 %v429, %v546
        %v553 = vmul.f32 %v432, %v546
        %v554 = vmul.f32 %v433, %v546
        %v555 = vmul.f32 %v436, %v546
        %v556 = vmul.f32 %v437, %v546
        %v557 = vmul.f32 %v440, %v546
        %v558 = vmul.f32 %v441, %v546
        %v559 = vmul.f32 %v444, %v546
        %v560 = vmul.f32 %v445, %v546
        %v561 = vmul.f32 %v448, %v546
        %v562 = vmul.f32 %v449, %v546
        %v563 = vmul.f32 %v452, %v546
        %v564 = vmul.f32 %v453, %v546
        %v565 = vmul.f32 %v456, %v546
        %v566 = vmul.f32 %v457, %v546
        %v567 = vmul.f32 %v460, %v546
        %v568 = vmul.f32 %v461, %v546
        %v569 = vmul.f32 %v464, %v546
        %v570 = vmul.f32 %v465, %v546
        %v571 = vmul.f32 %v468, %v546
        %v572 = vmul.f32 %v469, %v546
        %v573 = vmul.f32 %v472, %v546
        %v574 = vmul.f32 %v473, %v546
        %v575 = vmul.f32 %v476, %v546
        %v576 = vmul.f32 %v477, %v546
        %v577 = vmul.f32 %v480, %v546
        %v578 = vmul.f32 %v481, %v546
        %vm611 = vcmask 1046528
        %v612 = vrot.slane %v547, 1
        %v613 = vrot.slane %v548, 1
        %v614 = vsel %vm611, %v612, %v613
        %v615 = vrot.slane %v549, 1
        %v616 = vrot.slane %v550, 1
        %v617 = vsel %vm611, %v615, %v616
        %v618 = vrot.slane %v551, 1
        %v619 = vrot.slane %v552, 1
        %v620 = vsel %vm611, %v618, %v619
        %v621 = vrot.slane %v553, 1
        %v622 = vrot.slane %v554, 1
        %v623 = vsel %vm611, %v621, %v622
        %v624 = vrot.slane %v555, 1
        %v625 = vrot.slane %v556, 1
        %v626 = vsel %vm611, %v624, %v625
        %v627 = vrot.slane %v557, 1
        %v628 = vrot.slane %v558, 1
        %v629 = vsel %vm611, %v627, %v628
        %v630 = vrot.slane %v559, 1
        %v631 = vrot.slane %v560, 1
        %v632 = vsel %vm611, %v630, %v631
        %v633 = vrot.slane %v561, 1
        %v634 = vrot.slane %v562, 1
        %v635 = vsel %vm611, %v633, %v634
        %v636 = vrot.slane %v563, 1
        %v637 = vrot.slane %v564, 1
        %v638 = vsel %vm611, %v636, %v637
        %v639 = vrot.slane %v565, 1
        %v640 = vrot.slane %v566, 1
        %v641 = vsel %vm611, %v639, %v640
        %v642 = vrot.slane %v567, 1
        %v643 = vrot.slane %v568, 1
        %v644 = vsel %vm611, %v642, %v643
        %v645 = vrot.slane %v569, 1
        %v646 = vrot.slane %v570, 1
        %v647 = vsel %vm611, %v645, %v646
        %v648 = vrot.slane %v571, 1
        %v649 = vrot.slane %v572, 1
        %v650 = vsel %vm611, %v648, %v649
        %v651 = vrot.slane %v573, 1
        %v652 = vrot.slane %v574, 1
        %v653 = vsel %vm611, %v651, %v652
        %v654 = vrot.slane %v575, 1
        %v655 = vrot.slane %v576, 1
        %v656 = vsel %vm611, %v654, %v655
        %v657 = vrot.slane %v577, 1
        %v658 = vrot.slane %v578, 1
        %v659 = vsel %vm611, %v657, %v658
        %v708 = vadd.f32 %v495, %v612
        %v709 = vadd.f32 %v496, %v614
        %v710 = vadd.f32 %v497, %v613
        %v711 = vadd.f32 %v498, %v615
        %v712 = vadd.f32 %v499, %v617
        %v713 = vadd.f32 %v500, %v616
        %v714 = vadd.f32 %v501, %v618
        %v715 = vadd.f32 %v502, %v620
        %v716 = vadd.f32 %v503, %v619
        %v717 = vadd.f32 %v504, %v621
        %v718 = vadd.f32 %v505, %v623
        %v719 = vadd.f32 %v506, %v622
        %v720 = vadd.f32 %v507, %v624
        %v721 = vadd.f32 %v508, %v626
        %v722 = vadd.f32 %v509, %v625
        %v723 = vadd.f32 %v510, %v627
        %v724 = vadd.f32 %v511, %v629
        %v725 = vadd.f32 %v512, %v628
        %v726 = vadd.f32 %v513, %v630
        %v727 = vadd.f32 %v514, %v632
        %v728 = vadd.f32 %v515, %v631
        %v729 = vadd.f32 %v516, %v633
        %v730 = vadd.f32 %v517, %v635
        %v731 = vadd.f32 %v518, %v634
        %v732 = vadd.f32 %v519, %v636
        %v733 = vadd.f32 %v520, %v638
        %v734 = vadd.f32 %v521, %v637
        %v735 = vadd.f32 %v522, %v639
        %v736 = vadd.f32 %v523, %v641
        %v737 = vadd.f32 %v524, %v640
        %v738 = vadd.f32 %v525, %v642
        %v739 = vadd.f32 %v526, %v644
        %v740 = vadd.f32 %v527, %v643
        %v741 = vadd.f32 %v528, %v645
        %v742 = vadd.f32 %v529, %v647
        %v743 = vadd.f32 %v530, %v646
        %v744 = vadd.f32 %v531, %v648
        %v745 = vadd.f32 %v532, %v650
        %v746 = vadd.f32 %v533, %v649
        %v747 = vadd.f32 %v534, %v651
        %v748 = vadd.f32 %v535, %v653
        %v749 = vadd.f32 %v536, %v652
        %v750 = vadd.f32 %v537, %v654
        %v751 = vadd.f32 %v538, %v656
        %v752 = vadd.f32 %v539, %v655
        %v753 = vadd.f32 %v540, %v657
        %v754 = vadd.f32 %v541, %v659
        %v755 = vadd.f32 %v542, %v658
        %v756 = vlaneseq
        %v757 = vshrl.u32 %v756, 7
        %v758 = vsub.s32 2, %v757
        %v759 = vrot.slane %v416, %v758
        %v760 = vmul.f32 %v420, %v759
        %v761 = vmul.f32 %v421, %v759
        %v762 = vmul.f32 %v422, %v759
        %v763 = vmul.f32 %v424, %v759
        %v764 = vmul.f32 %v425, %v759
        %v765 = vmul.f32 %v426, %v759
        %v766 = vmul.f32 %v428, %v759
        %v767 = vmul.f32 %v429, %v759
        %v768 = vmul.f32 %v430, %v759
        %v769 = vmul.f32 %v432, %v759
        %v770 = vmul.f32 %v433, %v759
        %v771 = vmul.f32 %v434, %v759
        %v772 = vmul.f32 %v436, %v759
        %v773 = vmul.f32 %v437, %v759
        %v774 = vmul.f32 %v438, %v759
        %v775 = vmul.f32 %v440, %v759
        %v776 = vmul.f32 %v441, %v759
        %v777 = vmul.f32 %v442, %v759
        %v778 = vmul.f32 %v444, %v759
        %v779 = vmul.f32 %v445, %v759
        %v780 = vmul.f32 %v446, %v759
        %v781 = vmul.f32 %v448, %v759
        %v782 = vmul.f32 %v449, %v759
        %v783 = vmul.f32 %v450, %v759
        %v784 = vmul.f32 %v452, %v759
        %v785 = vmul.f32 %v453, %v759
        %v786 = vmul.f32 %v454, %v759
        %v787 = vmul.f32 %v456, %v759
        %v788 = vmul.f32 %v457, %v759
        %v789 = vmul.f32 %v458, %v759
        %v790 = vmul.f32 %v460, %v759
        %v791 = vmul.f32 %v461, %v759
        %v792 = vmul.f32 %v462, %v759
        %v793 = vmul.f32 %v464, %v759
        %v794 = vmul.f32 %v465, %v759
        %v795 = vmul.f32 %v466, %v759
        %v796 = vmul.f32 %v468, %v759
        %v797 = vmul.f32 %v469, %v759
        %v798 = vmul.f32 %v470, %v759
        %v799 = vmul.f32 %v472, %v759
        %v800 = vmul.f32 %v473, %v759
        %v801 = vmul.f32 %v474, %v759
        %v802 = vmul.f32 %v476, %v759
        %v803 = vmul.f32 %v477, %v759
        %v804 = vmul.f32 %v478, %v759
        %v805 = vmul.f32 %v480, %v759
        %v806 = vmul.f32 %v481, %v759
        %v807 = vmul.f32 %v482, %v759
        %vm856 = vcmask 1045504
        %v857 = vrot.slane %v760, 2
        %v858 = vrot.slane %v761, 2
        %v859 = vsel %vm856, %v857, %v858
        %v860 = vrot.slane %v762, 2
        %v861 = vsel %vm856, %v858, %v860
        %v862 = vrot.slane %v763, 2
        %v863 = vrot.slane %v764, 2
        %v864 = vsel %vm856, %v862, %v863
        %v865 = vrot.slane %v765, 2
        %v866 = vsel %vm856, %v863, %v865
        %v867 = vrot.slane %v766, 2
        %v868 = vrot.slane %v767, 2
        %v869 = vsel %vm856, %v867, %v868
        %v870 = vrot.slane %v768, 2
        %v871 = vsel %vm856, %v868, %v870
        %v872 = vrot.slane %v769, 2
        %v873 = vrot.slane %v770, 2
        %v874 = vsel %vm856, %v872, %v873
        %v875 = vrot.slane %v771, 2
        %v876 = vsel %vm856, %v873, %v875
        %v877 = vrot.slane %v772, 2
        %v878 = vrot.slane %v773, 2
        %v879 = vsel %vm856, %v877, %v878
        %v880 = vrot.slane %v774, 2
        %v881 = vsel %vm856, %v878, %v880
        %v882 = vrot.slane %v775, 2
        %v883 = vrot.slane %v776, 2
        %v884 = vsel %vm856, %v882, %v883
        %v885 = vrot.slane %v777, 2
        %v886 = vsel %vm856, %v883, %v885
        %v887 = vrot.slane %v778, 2
        %v888 = vrot.slane %v779, 2
        %v889 = vsel %vm856, %v887, %v888
        %v890 = vrot.slane %v780, 2
        %v891 = vsel %vm856, %v888, %v890
        %v892 = vrot.slane %v781, 2
        %v893 = vrot.slane %v782, 2
        %v894 = vsel %vm856, %v892, %v893
        %v895 = vrot.slane %v783, 2
        %v896 = vsel %vm856, %v893, %v895
        %v897 = vrot.slane %v784, 2
        %v898 = vrot.slane %v785, 2
        %v899 = vsel %vm856, %v897, %v898
        %v900 = vrot.slane %v786, 2
        %v901 = vsel %vm856, %v898, %v900
        %v902 = vrot.slane %v787, 2
        %v903 = vrot.slane %v788, 2
        %v904 = vsel %vm856, %v902, %v903
        %v905 = vrot.slane %v789, 2
        %v906 = vsel %vm856, %v903, %v905
        %v907 = vrot.slane %v790, 2
        %v908 = vrot.slane %v791, 2
        %v909 = vsel %vm856, %v907, %v908
        %v910 = vrot.slane %v792, 2
        %v911 = vsel %vm856, %v908, %v910
        %v912 = vrot.slane %v793, 2
        %v913 = vrot.slane %v794, 2
        %v914 = vsel %vm856, %v912, %v913
        %v915 = vrot.slane %v795, 2
        %v916 = vsel %vm856, %v913, %v915
        %v917 = vrot.slane %v796, 2
        %v918 = vrot.slane %v797, 2
        %v919 = vsel %vm856, %v917, %v918
        %v920 = vrot.slane %v798, 2
        %v921 = vsel %vm856, %v918, %v920
        %v922 = vrot.slane %v799, 2
        %v923 = vrot.slane %v800, 2
        %v924 = vsel %vm856, %v922, %v923
        %v925 = vrot.slane %v801, 2
        %v926 = vsel %vm856, %v923, %v925
        %v927 = vrot.slane %v802, 2
        %v928 = vrot.slane %v803, 2
        %v929 = vsel %vm856, %v927, %v928
        %v930 = vrot.slane %v804, 2
        %v931 = vsel %vm856, %v928, %v930
        %v932 = vrot.slane %v805, 2
        %v933 = vrot.slane %v806, 2
        %v934 = vsel %vm856, %v932, %v933
        %v935 = vrot.slane %v807, 2
        %v936 = vsel %vm856, %v933, %v935
        %v985 = vadd.f32 %v708, %v857
        %v986 = vadd.f32 %v709, %v859
        %v987 = vadd.f32 %v710, %v861
        %v988 = vadd.f32 %v711, %v862
        %v989 = vadd.f32 %v712, %v864
        %v990 = vadd.f32 %v713, %v866
        %v991 = vadd.f32 %v714, %v867
        %v992 = vadd.f32 %v715, %v869
        %v993 = vadd.f32 %v716, %v871
        %v994 = vadd.f32 %v717, %v872
        %v995 = vadd.f32 %v718, %v874
        %v996 = vadd.f32 %v719, %v876
        %v997 = vadd.f32 %v720, %v877
        %v998 = vadd.f32 %v721, %v879
        %v999 = vadd.f32 %v722, %v881
        %v1000 = vadd.f32 %v723, %v882
        %v1001 = vadd.f32 %v724, %v884
        %v1002 = vadd.f32 %v725, %v886
        %v1003 = vadd.f32 %v726, %v887
        %v1004 = vadd.f32 %v727, %v889
        %v1005 = vadd.f32 %v728, %v891
        %v1006 = vadd.f32 %v729, %v892
        %v1007 = vadd.f32 %v730, %v894
        %v1008 = vadd.f32 %v731, %v896
        %v1009 = vadd.f32 %v732, %v897
        %v1010 = vadd.f32 %v733, %v899
        %v1011 = vadd.f32 %v734, %v901
        %v1012 = vadd.f32 %v735, %v902
        %v1013 = vadd.f32 %v736, %v904
        %v1014 = vadd.f32 %v737, %v906
        %v1015 = vadd.f32 %v738, %v907
        %v1016 = vadd.f32 %v739, %v909
        %v1017 = vadd.f32 %v740, %v911
        %v1018 = vadd.f32 %v741, %v912
        %v1019 = vadd.f32 %v742, %v914
        %v1020 = vadd.f32 %v743, %v916
        %v1021 = vadd.f32 %v744, %v917
        %v1022 = vadd.f32 %v745, %v919
        %v1023 = vadd.f32 %v746, %v921
        %v1024 = vadd.f32 %v747, %v922
        %v1025 = vadd.f32 %v748, %v924
        %v1026 = vadd.f32 %v749, %v926
        %v1027 = vadd.f32 %v750, %v927
        %v1028 = vadd.f32 %v751, %v929
        %v1029 = vadd.f32 %v752, %v931
        %v1030 = vadd.f32 %v753, %v932
        %v1031 = vadd.f32 %v754, %v934
        %v1032 = vadd.f32 %v755, %v936
        %v1033 = vlaneseq
        %v1034 = vshrl.u32 %v1033, 7
        %v1035 = vsub.s32 0, %v1034
        %v1036 = vrot.slane %v417, %v1035
        %v1037 = vmul.f32 %v423, %v1036
        %v1038 = vmul.f32 %v424, %v1036
        %v1039 = vmul.f32 %v425, %v1036
        %v1040 = vmul.f32 %v427, %v1036
        %v1041 = vmul.f32 %v428, %v1036
        %v1042 = vmul.f32 %v429, %v1036
        %v1043 = vmul.f32 %v431, %v1036
        %v1044 = vmul.f32 %v432, %v1036
        %v1045 = vmul.f32 %v433, %v1036
        %v1046 = vmul.f32 %v435, %v1036
        %v1047 = vmul.f32 %v436, %v1036
        %v1048 = vmul.f32 %v437, %v1036
        %v1049 = vmul.f32 %v439, %v1036
        %v1050 = vmul.f32 %v440, %v1036
        %v1051 = vmul.f32 %v441, %v1036
        %v1052 = vmul.f32 %v443, %v1036
        %v1053 = vmul.f32 %v444, %v1036
        %v1054 = vmul.f32 %v445, %v1036
        %v1055 = vmul.f32 %v447, %v1036
        %v1056 = vmul.f32 %v448, %v1036
        %v1057 = vmul.f32 %v449, %v1036
        %v1058 = vmul.f32 %v451, %v1036
        %v1059 = vmul.f32 %v452, %v1036
        %v1060 = vmul.f32 %v453, %v1036
        %v1061 = vmul.f32 %v455, %v1036
        %v1062 = vmul.f32 %v456, %v1036
        %v1063 = vmul.f32 %v457, %v1036
        %v1064 = vmul.f32 %v459, %v1036
        %v1065 = vmul.f32 %v460, %v1036
        %v1066 = vmul.f32 %v461, %v1036
        %v1067 = vmul.f32 %v463, %v1036
        %v1068 = vmul.f32 %v464, %v1036
        %v1069 = vmul.f32 %v465, %v1036
        %v1070 = vmul.f32 %v467, %v1036
        %v1071 = vmul.f32 %v468, %v1036
        %v1072 = vmul.f32 %v469, %v1036
        %v1073 = vmul.f32 %v471, %v1036
        %v1074 = vmul.f32 %v472, %v1036
        %v1075 = vmul.f32 %v473, %v1036
        %v1076 = vmul.f32 %v475, %v1036
        %v1077 = vmul.f32 %v476, %v1036
        %v1078 = vmul.f32 %v477, %v1036
        %v1079 = vmul.f32 %v479, %v1036
        %v1080 = vmul.f32 %v480, %v1036
        %v1081 = vmul.f32 %v481, %v1036
        %v1082 = vmul.f32 %v483, %v1036
        %v1083 = vmul.f32 %v484, %v1036
        %v1084 = vmul.f32 %v485, %v1036
        %v1085 = vlaneseq
        %v1086 = vshrl.u32 %v1085, 7
        %v1087 = vsub.s32 1, %v1086
        %v1088 = vrot.slane %v417, %v1087
        %v1089 = vmul.f32 %v424, %v1088
        %v1090 = vmul.f32 %v425, %v1088
        %v1091 = vmul.f32 %v428, %v1088
        %v1092 = vmul.f32 %v429, %v1088
        %v1093 = vmul.f32 %v432, %v1088
        %v1094 = vmul.f32 %v433, %v1088
        %v1095 = vmul.f32 %v436, %v1088
        %v1096 = vmul.f32 %v437, %v1088
        %v1097 = vmul.f32 %v440, %v1088
        %v1098 = vmul.f32 %v441, %v1088
        %v1099 = vmul.f32 %v444, %v1088
        %v1100 = vmul.f32 %v445, %v1088
        %v1101 = vmul.f32 %v448, %v1088
        %v1102 = vmul.f32 %v449, %v1088
        %v1103 = vmul.f32 %v452, %v1088
        %v1104 = vmul.f32 %v453, %v1088
        %v1105 = vmul.f32 %v456, %v1088
        %v1106 = vmul.f32 %v457, %v1088
        %v1107 = vmul.f32 %v460, %v1088
        %v1108 = vmul.f32 %v461, %v1088
        %v1109 = vmul.f32 %v464, %v1088
        %v1110 = vmul.f32 %v465, %v1088
        %v1111 = vmul.f32 %v468, %v1088
        %v1112 = vmul.f32 %v469, %v1088
        %v1113 = vmul.f32 %v472, %v1088
        %v1114 = vmul.f32 %v473, %v1088
        %v1115 = vmul.f32 %v476, %v1088
        %v1116 = vmul.f32 %v477, %v1088
        %v1117 = vmul.f32 %v480, %v1088
        %v1118 = vmul.f32 %v481, %v1088
        %v1119 = vmul.f32 %v484, %v1088
        %v1120 = vmul.f32 %v485, %v1088
        %v1153 = vrot.slane %v1089, 1
        %v1154 = vrot.slane %v1090, 1
        %v1155 = vsel %vm611, %v1153, %v1154
        %v1156 = vrot.slane %v1091, 1
        %v1157 = vrot.slane %v1092, 1
        %v1158 = vsel %vm611, %v1156, %v1157
        %v1159 = vrot.slane %v1093, 1
        %v1160 = vrot.slane %v1094, 1
        %v1161 = vsel %vm611, %v1159, %v1160
        %v1162 = vrot.slane %v1095, 1
        %v1163 = vrot.slane %v1096, 1
        %v1164 = vsel %vm611, %v1162, %v1163
        %v1165 = vrot.slane %v1097, 1
        %v1166 = vrot.slane %v1098, 1
        %v1167 = vsel %vm611, %v1165, %v1166
        %v1168 = vrot.slane %v1099, 1
        %v1169 = vrot.slane %v1100, 1
        %v1170 = vsel %vm611, %v1168, %v1169
        %v1171 = vrot.slane %v1101, 1
        %v1172 = vrot.slane %v1102, 1
        %v1173 = vsel %vm611, %v1171, %v1172
        %v1174 = vrot.slane %v1103, 1
        %v1175 = vrot.slane %v1104, 1
        %v1176 = vsel %vm611, %v1174, %v1175
        %v1177 = vrot.slane %v1105, 1
        %v1178 = vrot.slane %v1106, 1
        %v1179 = vsel %vm611, %v1177, %v1178
        %v1180 = vrot.slane %v1107, 1
        %v1181 = vrot.slane %v1108, 1
        %v1182 = vsel %vm611, %v1180, %v1181
        %v1183 = vrot.slane %v1109, 1
        %v1184 = vrot.slane %v1110, 1
        %v1185 = vsel %vm611, %v1183, %v1184
        %v1186 = vrot.slane %v1111, 1
        %v1187 = vrot.slane %v1112, 1
        %v1188 = vsel %vm611, %v1186, %v1187
        %v1189 = vrot.slane %v1113, 1
        %v1190 = vrot.slane %v1114, 1
        %v1191 = vsel %vm611, %v1189, %v1190
        %v1192 = vrot.slane %v1115, 1
        %v1193 = vrot.slane %v1116, 1
        %v1194 = vsel %vm611, %v1192, %v1193
        %v1195 = vrot.slane %v1117, 1
        %v1196 = vrot.slane %v1118, 1
        %v1197 = vsel %vm611, %v1195, %v1196
        %v1198 = vrot.slane %v1119, 1
        %v1199 = vrot.slane %v1120, 1
        %v1200 = vsel %vm611, %v1198, %v1199
        %v1249 = vadd.f32 %v1037, %v1153
        %v1250 = vadd.f32 %v1038, %v1155
        %v1251 = vadd.f32 %v1039, %v1154
        %v1252 = vadd.f32 %v1040, %v1156
        %v1253 = vadd.f32 %v1041, %v1158
        %v1254 = vadd.f32 %v1042, %v1157
        %v1255 = vadd.f32 %v1043, %v1159
        %v1256 = vadd.f32 %v1044, %v1161
        %v1257 = vadd.f32 %v1045, %v1160
        %v1258 = vadd.f32 %v1046, %v1162
        %v1259 = vadd.f32 %v1047, %v1164
        %v1260 = vadd.f32 %v1048, %v1163
        %v1261 = vadd.f32 %v1049, %v1165
        %v1262 = vadd.f32 %v1050, %v1167
        %v1263 = vadd.f32 %v1051, %v1166
        %v1264 = vadd.f32 %v1052, %v1168
        %v1265 = vadd.f32 %v1053, %v1170
        %v1266 = vadd.f32 %v1054, %v1169
        %v1267 = vadd.f32 %v1055, %v1171
        %v1268 = vadd.f32 %v1056, %v1173
        %v1269 = vadd.f32 %v1057, %v1172
        %v1270 = vadd.f32 %v1058, %v1174
        %v1271 = vadd.f32 %v1059, %v1176
        %v1272 = vadd.f32 %v1060, %v1175
        %v1273 = vadd.f32 %v1061, %v1177
        %v1274 = vadd.f32 %v1062, %v1179
        %v1275 = vadd.f32 %v1063, %v1178
        %v1276 = vadd.f32 %v1064, %v1180
        %v1277 = vadd.f32 %v1065, %v1182
        %v1278 = vadd.f32 %v1066, %v1181
        %v1279 = vadd.f32 %v1067, %v1183
        %v1280 = vadd.f32 %v1068, %v1185
        %v1281 = vadd.f32 %v1069, %v1184
        %v1282 = vadd.f32 %v1070, %v1186
        %v1283 = vadd.f32 %v1071, %v1188
        %v1284 = vadd.f32 %v1072, %v1187
        %v1285 = vadd.f32 %v1073, %v1189
        %v1286 = vadd.f32 %v1074, %v1191
        %v1287 = vadd.f32 %v1075, %v1190
        %v1288 = vadd.f32 %v1076, %v1192
        %v1289 = vadd.f32 %v1077, %v1194
        %v1290 = vadd.f32 %v1078, %v1193
        %v1291 = vadd.f32 %v1079, %v1195
        %v1292 = vadd.f32 %v1080, %v1197
        %v1293 = vadd.f32 %v1081, %v1196
        %v1294 = vadd.f32 %v1082, %v1198
        %v1295 = vadd.f32 %v1083, %v1200
        %v1296 = vadd.f32 %v1084, %v1199
        %v1297 = vlaneseq
        %v1298 = vshrl.u32 %v1297, 7
        %v1299 = vsub.s32 2, %v1298
        %v1300 = vrot.slane %v417, %v1299
        %v1301 = vmul.f32 %v424, %v1300
        %v1302 = vmul.f32 %v425, %v1300
        %v1303 = vmul.f32 %v426, %v1300
        %v1304 = vmul.f32 %v428, %v1300
        %v1305 = vmul.f32 %v429, %v1300
        %v1306 = vmul.f32 %v430, %v1300
        %v1307 = vmul.f32 %v432, %v1300
        %v1308 = vmul.f32 %v433, %v1300
        %v1309 = vmul.f32 %v434, %v1300
        %v1310 = vmul.f32 %v436, %v1300
        %v1311 = vmul.f32 %v437, %v1300
        %v1312 = vmul.f32 %v438, %v1300
        %v1313 = vmul.f32 %v440, %v1300
        %v1314 = vmul.f32 %v441, %v1300
        %v1315 = vmul.f32 %v442, %v1300
        %v1316 = vmul.f32 %v444, %v1300
        %v1317 = vmul.f32 %v445, %v1300
        %v1318 = vmul.f32 %v446, %v1300
        %v1319 = vmul.f32 %v448, %v1300
        %v1320 = vmul.f32 %v449, %v1300
        %v1321 = vmul.f32 %v450, %v1300
        %v1322 = vmul.f32 %v452, %v1300
        %v1323 = vmul.f32 %v453, %v1300
        %v1324 = vmul.f32 %v454, %v1300
        %v1325 = vmul.f32 %v456, %v1300
        %v1326 = vmul.f32 %v457, %v1300
        %v1327 = vmul.f32 %v458, %v1300
        %v1328 = vmul.f32 %v460, %v1300
        %v1329 = vmul.f32 %v461, %v1300
        %v1330 = vmul.f32 %v462, %v1300
        %v1331 = vmul.f32 %v464, %v1300
        %v1332 = vmul.f32 %v465, %v1300
        %v1333 = vmul.f32 %v466, %v1300
        %v1334 = vmul.f32 %v468, %v1300
        %v1335 = vmul.f32 %v469, %v1300
        %v1336 = vmul.f32 %v470, %v1300
        %v1337 = vmul.f32 %v472, %v1300
        %v1338 = vmul.f32 %v473, %v1300
        %v1339 = vmul.f32 %v474, %v1300
        %v1340 = vmul.f32 %v476, %v1300
        %v1341 = vmul.f32 %v477, %v1300
        %v1342 = vmul.f32 %v478, %v1300
        %v1343 = vmul.f32 %v480, %v1300
        %v1344 = vmul.f32 %v481, %v1300
        %v1345 = vmul.f32 %v482, %v1300
        %v1346 = vmul.f32 %v484, %v1300
        %v1347 = vmul.f32 %v485, %v1300
        %v1348 = vmul.f32 %v486, %v1300
        %v1397 = vrot.slane %v1301, 2
        %v1398 = vrot.slane %v1302, 2
        %v1399 = vsel %vm856, %v1397, %v1398
        %v1400 = vrot.slane %v1303, 2
        %v1401 = vsel %vm856, %v1398, %v1400
        %v1402 = vrot.slane %v1304, 2
        %v1403 = vrot.slane %v1305, 2
        %v1404 = vsel %vm856, %v1402, %v1403
        %v1405 = vrot.slane %v1306, 2
        %v1406 = vsel %vm856, %v1403, %v1405
        %v1407 = vrot.slane %v1307, 2
        %v1408 = vrot.slane %v1308, 2
        %v1409 = vsel %vm856, %v1407, %v1408
        %v1410 = vrot.slane %v1309, 2
        %v1411 = vsel %vm856, %v1408, %v1410
        %v1412 = vrot.slane %v1310, 2
        %v1413 = vrot.slane %v1311, 2
        %v1414 = vsel %vm856, %v1412, %v1413
        %v1415 = vrot.slane %v1312, 2
        %v1416 = vsel %vm856, %v1413, %v1415
        %v1417 = vrot.slane %v1313, 2
        %v1418 = vrot.slane %v1314, 2
        %v1419 = vsel %vm856, %v1417, %v1418
        %v1420 = vrot.slane %v1315, 2
        %v1421 = vsel %vm856, %v1418, %v1420
        %v1422 = vrot.slane %v1316, 2
        %v1423 = vrot.slane %v1317, 2
        %v1424 = vsel %vm856, %v1422, %v1423
        %v1425 = vrot.slane %v1318, 2
        %v1426 = vsel %vm856, %v1423, %v1425
        %v1427 = vrot.slane %v1319, 2
        %v1428 = vrot.slane %v1320, 2
        %v1429 = vsel %vm856, %v1427, %v1428
        %v1430 = vrot.slane %v1321, 2
        %v1431 = vsel %vm856, %v1428, %v1430
        %v1432 = vrot.slane %v1322, 2
        %v1433 = vrot.slane %v1323, 2
        %v1434 = vsel %vm856, %v1432, %v1433
        %v1435 = vrot.slane %v1324, 2
        %v1436 = vsel %vm856, %v1433, %v1435
        %v1437 = vrot.slane %v1325, 2
        %v1438 = vrot.slane %v1326, 2
        %v1439 = vsel %vm856, %v1437, %v1438
        %v1440 = vrot.slane %v1327, 2
        %v1441 = vsel %vm856, %v1438, %v1440
        %v1442 = vrot.slane %v1328, 2
        %v1443 = vrot.slane %v1329, 2
        %v1444 = vsel %vm856, %v1442, %v1443
        %v1445 = vrot.slane %v1330, 2
        %v1446 = vsel %vm856, %v1443, %v1445
        %v1447 = vrot.slane %v1331, 2
        %v1448 = vrot.slane %v1332, 2
        %v1449 = vsel %vm856, %v1447, %v1448
        %v1450 = vrot.slane %v1333, 2
        %v1451 = vsel %vm856, %v1448, %v1450
        %v1452 = vrot.slane %v1334, 2
        %v1453 = vrot.slane %v1335, 2
        %v1454 = vsel %vm856, %v1452, %v1453
        %v1455 = vrot.slane %v1336, 2
        %v1456 = vsel %vm856, %v1453, %v1455
        %v1457 = vrot.slane %v1337, 2
        %v1458 = vrot.slane %v1338, 2
        %v1459 = vsel %vm856, %v1457, %v1458
        %v1460 = vrot.slane %v1339, 2
        %v1461 = vsel %vm856, %v1458, %v1460
        %v1462 = vrot.slane %v1340, 2
        %v1463 = vrot.slane %v1341, 2
        %v1464 = vsel %vm856, %v1462, %v1463
        %v1465 = vrot.slane %v1342, 2
        %v1466 = vsel %vm856, %v1463, %v1465
        %v1467 = vrot.slane %v1343, 2
        %v1468 = vrot.slane %v1344, 2
        %v1469 = vsel %vm856, %v1467, %v1468
        %v1470 = vrot.slane %v1345, 2
        %v1471 = vsel %vm856, %v1468, %v1470
        %v1472 = vrot.slane %v1346, 2
        %v1473 = vrot.slane %v1347, 2
        %v1474 = vsel %vm856, %v1472, %v1473
        %v1475 = vrot.slane %v1348, 2
        %v1476 = vsel %vm856, %v1473, %v1475
        %v1525 = vadd.f32 %v1249, %v1397
        %v1526 = vadd.f32 %v1250, %v1399
        %v1527 = vadd.f32 %v1251, %v1401
        %v1528 = vadd.f32 %v1252, %v1402
        %v1529 = vadd.f32 %v1253, %v1404
        %v1530 = vadd.f32 %v1254, %v1406
        %v1531 = vadd.f32 %v1255, %v1407
        %v1532 = vadd.f32 %v1256, %v1409
        %v1533 = vadd.f32 %v1257, %v1411
        %v1534 = vadd.f32 %v1258, %v1412
        %v1535 = vadd.f32 %v1259, %v1414
        %v1536 = vadd.f32 %v1260, %v1416
        %v1537 = vadd.f32 %v1261, %v1417
        %v1538 = vadd.f32 %v1262, %v1419
        %v1539 = vadd.f32 %v1263, %v1421
        %v1540 = vadd.f32 %v1264, %v1422
        %v1541 = vadd.f32 %v1265, %v1424
        %v1542 = vadd.f32 %v1266, %v1426
        %v1543 = vadd.f32 %v1267, %v1427
        %v1544 = vadd.f32 %v1268, %v1429
        %v1545 = vadd.f32 %v1269, %v1431
        %v1546 = vadd.f32 %v1270, %v1432
        %v1547 = vadd.f32 %v1271, %v1434
        %v1548 = vadd.f32 %v1272, %v1436
        %v1549 = vadd.f32 %v1273, %v1437
        %v1550 = vadd.f32 %v1274, %v1439
        %v1551 = vadd.f32 %v1275, %v1441
        %v1552 = vadd.f32 %v1276, %v1442
        %v1553 = vadd.f32 %v1277, %v1444
        %v1554 = vadd.f32 %v1278, %v1446
        %v1555 = vadd.f32 %v1279, %v1447
        %v1556 = vadd.f32 %v1280, %v1449
        %v1557 = vadd.f32 %v1281, %v1451
        %v1558 = vadd.f32 %v1282, %v1452
        %v1559 = vadd.f32 %v1283, %v1454
        %v1560 = vadd.f32 %v1284, %v1456
        %v1561 = vadd.f32 %v1285, %v1457
        %v1562 = vadd.f32 %v1286, %v1459
        %v1563 = vadd.f32 %v1287, %v1461
        %v1564 = vadd.f32 %v1288, %v1462
        %v1565 = vadd.f32 %v1289, %v1464
        %v1566 = vadd.f32 %v1290, %v1466
        %v1567 = vadd.f32 %v1291, %v1467
        %v1568 = vadd.f32 %v1292, %v1469
        %v1569 = vadd.f32 %v1293, %v1471
        %v1570 = vadd.f32 %v1294, %v1472
        %v1571 = vadd.f32 %v1295, %v1474
        %v1572 = vadd.f32 %v1296, %v1476
        %v1573 = vadd.f32 %v985, %v1525
        %v1574 = vadd.f32 %v986, %v1526
        %v1575 = vadd.f32 %v987, %v1527
        %v1576 = vadd.f32 %v988, %v1528
        %v1577 = vadd.f32 %v989, %v1529
        %v1578 = vadd.f32 %v990, %v1530
        %v1579 = vadd.f32 %v991, %v1531
        %v1580 = vadd.f32 %v992, %v1532
        %v1581 = vadd.f32 %v993, %v1533
        %v1582 = vadd.f32 %v994, %v1534
        %v1583 = vadd.f32 %v995, %v1535
        %v1584 = vadd.f32 %v996, %v1536
        %v1585 = vadd.f32 %v997, %v1537
        %v1586 = vadd.f32 %v998, %v1538
        %v1587 = vadd.f32 %v999, %v1539
        %v1588 = vadd.f32 %v1000, %v1540
        %v1589 = vadd.f32 %v1001, %v1541
        %v1590 = vadd.f32 %v1002, %v1542
        %v1591 = vadd.f32 %v1003, %v1543
        %v1592 = vadd.f32 %v1004, %v1544
        %v1593 = vadd.f32 %v1005, %v1545
        %v1594 = vadd.f32 %v1006, %v1546
        %v1595 = vadd.f32 %v1007, %v1547
        %v1596 = vadd.f32 %v1008, %v1548
        %v1597 = vadd.f32 %v1009, %v1549
        %v1598 = vadd.f32 %v1010, %v1550
        %v1599 = vadd.f32 %v1011, %v1551
        %v1600 = vadd.f32 %v1012, %v1552
        %v1601 = vadd.f32 %v1013, %v1553
        %v1602 = vadd.f32 %v1014, %v1554
        %v1603 = vadd.f32 %v1015, %v1555
        %v1604 = vadd.f32 %v1016, %v1556
        %v1605 = vadd.f32 %v1017, %v1557
        %v1606 = vadd.f32 %v1018, %v1558
        %v1607 = vadd.f32 %v1019, %v1559
        %v1608 = vadd.f32 %v1020, %v1560
        %v1609 = vadd.f32 %v1021, %v1561
        %v1610 = vadd.f32 %v1022, %v1562
        %v1611 = vadd.f32 %v1023, %v1563
        %v1612 = vadd.f32 %v1024, %v1564
        %v1613 = vadd.f32 %v1025, %v1565
        %v1614 = vadd.f32 %v1026, %v1566
        %v1615 = vadd.f32 %v1027, %v1567
        %v1616 = vadd.f32 %v1028, %v1568
        %v1617 = vadd.f32 %v1029, %v1569
        %v1618 = vadd.f32 %v1030, %v1570
        %v1619 = vadd.f32 %v1031, %v1571
        %v1620 = vadd.f32 %v1032, %v1572
        %v1621 = vlaneseq
        %v1622 = vshrl.u32 %v1621, 7
        %v1623 = vsub.s32 0, %v1622
        %v1624 = vrot.slane %v418, %v1623
        %v1625 = vmul.f32 %v427, %v1624
        %v1626 = vmul.f32 %v428, %v1624
        %v1627 = vmul.f32 %v429, %v1624
        %v1628 = vmul.f32 %v431, %v1624
        %v1629 = vmul.f32 %v432, %v1624
        %v1630 = vmul.f32 %v433, %v1624
        %v1631 = vmul.f32 %v435, %v1624
        %v1632 = vmul.f32 %v436, %v1624
        %v1633 = vmul.f32 %v437, %v1624
        %v1634 = vmul.f32 %v439, %v1624
        %v1635 = vmul.f32 %v440, %v1624
        %v1636 = vmul.f32 %v441, %v1624
        %v1637 = vmul.f32 %v443, %v1624
        %v1638 = vmul.f32 %v444, %v1624
        %v1639 = vmul.f32 %v445, %v1624
        %v1640 = vmul.f32 %v447, %v1624
        %v1641 = vmul.f32 %v448, %v1624
        %v1642 = vmul.f32 %v449, %v1624
        %v1643 = vmul.f32 %v451, %v1624
        %v1644 = vmul.f32 %v452, %v1624
        %v1645 = vmul.f32 %v453, %v1624
        %v1646 = vmul.f32 %v455, %v1624
        %v1647 = vmul.f32 %v456, %v1624
        %v1648 = vmul.f32 %v457, %v1624
        %v1649 = vmul.f32 %v459, %v1624
        %v1650 = vmul.f32 %v460, %v1624
        %v1651 = vmul.f32 %v461, %v1624
        %v1652 = vmul.f32 %v463, %v1624
        %v1653 = vmul.f32 %v464, %v1624
        %v1654 = vmul.f32 %v465, %v1624
        %v1655 = vmul.f32 %v467, %v1624
        %v1656 = vmul.f32 %v468, %v1624
        %v1657 = vmul.f32 %v469, %v1624
        %v1658 = vmul.f32 %v471, %v1624
        %v1659 = vmul.f32 %v472, %v1624
        %v1660 = vmul.f32 %v473, %v1624
        %v1661 = vmul.f32 %v475, %v1624
        %v1662 = vmul.f32 %v476, %v1624
        %v1663 = vmul.f32 %v477, %v1624
        %v1664 = vmul.f32 %v479, %v1624
        %v1665 = vmul.f32 %v480, %v1624
        %v1666 = vmul.f32 %v481, %v1624
        %v1667 = vmul.f32 %v483, %v1624
        %v1668 = vmul.f32 %v484, %v1624
        %v1669 = vmul.f32 %v485, %v1624
        %v1670 = vmul.f32 %v487, %v1624
        %v1671 = vmul.f32 %v488, %v1624
        %v1672 = vmul.f32 %v489, %v1624
        %v1673 = vlaneseq
        %v1674 = vshrl.u32 %v1673, 7
        %v1675 = vsub.s32 1, %v1674
        %v1676 = vrot.slane %v418, %v1675
        %v1677 = vmul.f32 %v428, %v1676
        %v1678 = vmul.f32 %v429, %v1676
        %v1679 = vmul.f32 %v432, %v1676
        %v1680 = vmul.f32 %v433, %v1676
        %v1681 = vmul.f32 %v436, %v1676
        %v1682 = vmul.f32 %v437, %v1676
        %v1683 = vmul.f32 %v440, %v1676
        %v1684 = vmul.f32 %v441, %v1676
        %v1685 = vmul.f32 %v444, %v1676
        %v1686 = vmul.f32 %v445, %v1676
        %v1687 = vmul.f32 %v448, %v1676
        %v1688 = vmul.f32 %v449, %v1676
        %v1689 = vmul.f32 %v452, %v1676
        %v1690 = vmul.f32 %v453, %v1676
        %v1691 = vmul.f32 %v456, %v1676
        %v1692 = vmul.f32 %v457, %v1676
        %v1693 = vmul.f32 %v460, %v1676
        %v1694 = vmul.f32 %v461, %v1676
        %v1695 = vmul.f32 %v464, %v1676
        %v1696 = vmul.f32 %v465, %v1676
        %v1697 = vmul.f32 %v468, %v1676
        %v1698 = vmul.f32 %v469, %v1676
        %v1699 = vmul.f32 %v472, %v1676
        %v1700 = vmul.f32 %v473, %v1676
        %v1701 = vmul.f32 %v476, %v1676
        %v1702 = vmul.f32 %v477, %v1676
        %v1703 = vmul.f32 %v480, %v1676
        %v1704 = vmul.f32 %v481, %v1676
        %v1705 = vmul.f32 %v484, %v1676
        %v1706 = vmul.f32 %v485, %v1676
        %v1707 = vmul.f32 %v488, %v1676
        %v1708 = vmul.f32 %v489, %v1676
        %v1741 = vrot.slane %v1677, 1
        %v1742 = vrot.slane %v1678, 1
        %v1743 = vsel %vm611, %v1741, %v1742
        %v1744 = vrot.slane %v1679, 1
        %v1745 = vrot.slane %v1680, 1
        %v1746 = vsel %vm611, %v1744, %v1745
        %v1747 = vrot.slane %v1681, 1
        %v1748 = vrot.slane %v1682, 1
        %v1749 = vsel %vm611, %v1747, %v1748
        %v1750 = vrot.slane %v1683, 1
        %v1751 = vrot.slane %v1684, 1
        %v1752 = vsel %vm611, %v1750, %v1751
        %v1753 = vrot.slane %v1685, 1
        %v1754 = vrot.slane %v1686, 1
        %v1755 = vsel %vm611, %v1753, %v1754
        %v1756 = vrot.slane %v1687, 1
        %v1757 = vrot.slane %v1688, 1
        %v1758 = vsel %vm611, %v1756, %v1757
        %v1759 = vrot.slane %v1689, 1
        %v1760 = vrot.slane %v1690, 1
        %v1761 = vsel %vm611, %v1759, %v1760
        %v1762 = vrot.slane %v1691, 1
        %v1763 = vrot.slane %v1692, 1
        %v1764 = vsel %vm611, %v1762, %v1763
        %v1765 = vrot.slane %v1693, 1
        %v1766 = vrot.slane %v1694, 1
        %v1767 = vsel %vm611, %v1765, %v1766
        %v1768 = vrot.slane %v1695, 1
        %v1769 = vrot.slane %v1696, 1
        %v1770 = vsel %vm611, %v1768, %v1769
        %v1771 = vrot.slane %v1697, 1
        %v1772 = vrot.slane %v1698, 1
        %v1773 = vsel %vm611, %v1771, %v1772
        %v1774 = vrot.slane %v1699, 1
        %v1775 = vrot.slane %v1700, 1
        %v1776 = vsel %vm611, %v1774, %v1775
        %v1777 = vrot.slane %v1701, 1
        %v1778 = vrot.slane %v1702, 1
        %v1779 = vsel %vm611, %v1777, %v1778
        %v1780 = vrot.slane %v1703, 1
        %v1781 = vrot.slane %v1704, 1
        %v1782 = vsel %vm611, %v1780, %v1781
        %v1783 = vrot.slane %v1705, 1
        %v1784 = vrot.slane %v1706, 1
        %v1785 = vsel %vm611, %v1783, %v1784
        %v1786 = vrot.slane %v1707, 1
        %v1787 = vrot.slane %v1708, 1
        %v1788 = vsel %vm611, %v1786, %v1787
        %v1837 = vadd.f32 %v1625, %v1741
        %v1838 = vadd.f32 %v1626, %v1743
        %v1839 = vadd.f32 %v1627, %v1742
        %v1840 = vadd.f32 %v1628, %v1744
        %v1841 = vadd.f32 %v1629, %v1746
        %v1842 = vadd.f32 %v1630, %v1745
        %v1843 = vadd.f32 %v1631, %v1747
        %v1844 = vadd.f32 %v1632, %v1749
        %v1845 = vadd.f32 %v1633, %v1748
        %v1846 = vadd.f32 %v1634, %v1750
        %v1847 = vadd.f32 %v1635, %v1752
        %v1848 = vadd.f32 %v1636, %v1751
        %v1849 = vadd.f32 %v1637, %v1753
        %v1850 = vadd.f32 %v1638, %v1755
        %v1851 = vadd.f32 %v1639, %v1754
        %v1852 = vadd.f32 %v1640, %v1756
        %v1853 = vadd.f32 %v1641, %v1758
        %v1854 = vadd.f32 %v1642, %v1757
        %v1855 = vadd.f32 %v1643, %v1759
        %v1856 = vadd.f32 %v1644, %v1761
        %v1857 = vadd.f32 %v1645, %v1760
        %v1858 = vadd.f32 %v1646, %v1762
        %v1859 = vadd.f32 %v1647, %v1764
        %v1860 = vadd.f32 %v1648, %v1763
        %v1861 = vadd.f32 %v1649, %v1765
        %v1862 = vadd.f32 %v1650, %v1767
        %v1863 = vadd.f32 %v1651, %v1766
        %v1864 = vadd.f32 %v1652, %v1768
        %v1865 = vadd.f32 %v1653, %v1770
        %v1866 = vadd.f32 %v1654, %v1769
        %v1867 = vadd.f32 %v1655, %v1771
        %v1868 = vadd.f32 %v1656, %v1773
        %v1869 = vadd.f32 %v1657, %v1772
        %v1870 = vadd.f32 %v1658, %v1774
        %v1871 = vadd.f32 %v1659, %v1776
        %v1872 = vadd.f32 %v1660, %v1775
        %v1873 = vadd.f32 %v1661, %v1777
        %v1874 = vadd.f32 %v1662, %v1779
        %v1875 = vadd.f32 %v1663, %v1778
        %v1876 = vadd.f32 %v1664, %v1780
        %v1877 = vadd.f32 %v1665, %v1782
        %v1878 = vadd.f32 %v1666, %v1781
        %v1879 = vadd.f32 %v1667, %v1783
        %v1880 = vadd.f32 %v1668, %v1785
        %v1881 = vadd.f32 %v1669, %v1784
        %v1882 = vadd.f32 %v1670, %v1786
        %v1883 = vadd.f32 %v1671, %v1788
        %v1884 = vadd.f32 %v1672, %v1787
        %v1885 = vlaneseq
        %v1886 = vshrl.u32 %v1885, 7
        %v1887 = vsub.s32 2, %v1886
        %v1888 = vrot.slane %v418, %v1887
        %v1889 = vmul.f32 %v428, %v1888
        %v1890 = vmul.f32 %v429, %v1888
        %v1891 = vmul.f32 %v430, %v1888
        %v1892 = vmul.f32 %v432, %v1888
        %v1893 = vmul.f32 %v433, %v1888
        %v1894 = vmul.f32 %v434, %v1888
        %v1895 = vmul.f32 %v436, %v1888
        %v1896 = vmul.f32 %v437, %v1888
        %v1897 = vmul.f32 %v438, %v1888
        %v1898 = vmul.f32 %v440, %v1888
        %v1899 = vmul.f32 %v441, %v1888
        %v1900 = vmul.f32 %v442, %v1888
        %v1901 = vmul.f32 %v444, %v1888
        %v1902 = vmul.f32 %v445, %v1888
        %v1903 = vmul.f32 %v446, %v1888
        %v1904 = vmul.f32 %v448, %v1888
        %v1905 = vmul.f32 %v449, %v1888
        %v1906 = vmul.f32 %v450, %v1888
        %v1907 = vmul.f32 %v452, %v1888
        %v1908 = vmul.f32 %v453, %v1888
        %v1909 = vmul.f32 %v454, %v1888
        %v1910 = vmul.f32 %v456, %v1888
        %v1911 = vmul.f32 %v457, %v1888
        %v1912 = vmul.f32 %v458, %v1888
        %v1913 = vmul.f32 %v460, %v1888
        %v1914 = vmul.f32 %v461, %v1888
        %v1915 = vmul.f32 %v462, %v1888
        %v1916 = vmul.f32 %v464, %v1888
        %v1917 = vmul.f32 %v465, %v1888
        %v1918 = vmul.f32 %v466, %v1888
        %v1919 = vmul.f32 %v468, %v1888
        %v1920 = vmul.f32 %v469, %v1888
        %v1921 = vmul.f32 %v470, %v1888
        %v1922 = vmul.f32 %v472, %v1888
        %v1923 = vmul.f32 %v473, %v1888
        %v1924 = vmul.f32 %v474, %v1888
        %v1925 = vmul.f32 %v476, %v1888
        %v1926 = vmul.f32 %v477, %v1888
        %v1927 = vmul.f32 %v478, %v1888
        %v1928 = vmul.f32 %v480, %v1888
        %v1929 = vmul.f32 %v481, %v1888
        %v1930 = vmul.f32 %v482, %v1888
        %v1931 = vmul.f32 %v484, %v1888
        %v1932 = vmul.f32 %v485, %v1888
        %v1933 = vmul.f32 %v486, %v1888
        %v1934 = vmul.f32 %v488, %v1888
        %v1935 = vmul.f32 %v489, %v1888
        %v1936 = vmul.f32 %v490, %v1888
        %v1985 = vrot.slane %v1889, 2
        %v1986 = vrot.slane %v1890, 2
        %v1987 = vsel %vm856, %v1985, %v1986
        %v1988 = vrot.slane %v1891, 2
        %v1989 = vsel %vm856, %v1986, %v1988
        %v1990 = vrot.slane %v1892, 2
        %v1991 = vrot.slane %v1893, 2
        %v1992 = vsel %vm856, %v1990, %v1991
        %v1993 = vrot.slane %v1894, 2
        %v1994 = vsel %vm856, %v1991, %v1993
        %v1995 = vrot.slane %v1895, 2
        %v1996 = vrot.slane %v1896, 2
        %v1997 = vsel %vm856, %v1995, %v1996
        %v1998 = vrot.slane %v1897, 2
        %v1999 = vsel %vm856, %v1996, %v1998
        %v2000 = vrot.slane %v1898, 2
        %v2001 = vrot.slane %v1899, 2
        %v2002 = vsel %vm856, %v2000, %v2001
        %v2003 = vrot.slane %v1900, 2
        %v2004 = vsel %vm856, %v2001, %v2003
        %v2005 = vrot.slane %v1901, 2
        %v2006 = vrot.slane %v1902, 2
        %v2007 = vsel %vm856, %v2005, %v2006
        %v2008 = vrot.slane %v1903, 2
        %v2009 = vsel %vm856, %v2006, %v2008
        %v2010 = vrot.slane %v1904, 2
        %v2011 = vrot.slane %v1905, 2
        %v2012 = vsel %vm856, %v2010, %v2011
        %v2013 = vrot.slane %v1906, 2
        %v2014 = vsel %vm856, %v2011, %v2013
        %v2015 = vrot.slane %v1907, 2
        %v2016 = vrot.slane %v1908, 2
        %v2017 = vsel %vm856, %v2015, %v2016
        %v2018 = vrot.slane %v1909, 2
        %v2019 = vsel %vm856, %v2016, %v2018
        %v2020 = vrot.slane %v1910, 2
        %v2021 = vrot.slane %v1911, 2
        %v2022 = vsel %vm856, %v2020, %v2021
        %v2023 = vrot.slane %v1912, 2
        %v2024 = vsel %vm856, %v2021, %v2023
        %v2025 = vrot.slane %v1913, 2
        %v2026 = vrot.slane %v1914, 2
        %v2027 = vsel %vm856, %v2025, %v2026
        %v2028 = vrot.slane %v1915, 2
        %v2029 = vsel %vm856, %v2026, %v2028
        %v2030 = vrot.slane %v1916, 2
        %v2031 = vrot.slane %v1917, 2
        %v2032 = vsel %vm856, %v2030, %v2031
        %v2033 = vrot.slane %v1918, 2
        %v2034 = vsel %vm856, %v2031, %v2033
        %v2035 = vrot.slane %v1919, 2
        %v2036 = vrot.slane %v1920, 2
        %v2037 = vsel %vm856, %v2035, %v2036
        %v2038 = vrot.slane %v1921, 2
        %v2039 = vsel %vm856, %v2036, %v2038
        %v2040 = vrot.slane %v1922, 2
        %v2041 = vrot.slane %v1923, 2
        %v2042 = vsel %vm856, %v2040, %v2041
        %v2043 = vrot.slane %v1924, 2
        %v2044 = vsel %vm856, %v2041, %v2043
        %v2045 = vrot.slane %v1925, 2
        %v2046 = vrot.slane %v1926, 2
        %v2047 = vsel %vm856, %v2045, %v2046
        %v2048 = vrot.slane %v1927, 2
        %v2049 = vsel %vm856, %v2046, %v2048
        %v2050 = vrot.slane %v1928, 2
        %v2051 = vrot.slane %v1929, 2
        %v2052 = vsel %vm856, %v2050, %v2051
        %v2053 = vrot.slane %v1930, 2
        %v2054 = vsel %vm856, %v2051, %v2053
        %v2055 = vrot.slane %v1931, 2
        %v2056 = vrot.slane %v1932, 2
        %v2057 = vsel %vm856, %v2055, %v2056
        %v2058 = vrot.slane %v1933, 2
        %v2059 = vsel %vm856, %v2056, %v2058
        %v2060 = vrot.slane %v1934, 2
        %v2061 = vrot.slane %v1935, 2
        %v2062 = vsel %vm856, %v2060, %v2061
        %v2063 = vrot.slane %v1936, 2
        %v2064 = vsel %vm856, %v2061, %v2063
        %v2113 = vadd.f32 %v1837, %v1985
        %v2114 = vadd.f32 %v1838, %v1987
        %v2115 = vadd.f32 %v1839, %v1989
        %v2116 = vadd.f32 %v1840, %v1990
        %v2117 = vadd.f32 %v1841, %v1992
        %v2118 = vadd.f32 %v1842, %v1994
        %v2119 = vadd.f32 %v1843, %v1995
        %v2120 = vadd.f32 %v1844, %v1997
        %v2121 = vadd.f32 %v1845, %v1999
        %v2122 = vadd.f32 %v1846, %v2000
        %v2123 = vadd.f32 %v1847, %v2002
        %v2124 = vadd.f32 %v1848, %v2004
        %v2125 = vadd.f32 %v1849, %v2005
        %v2126 = vadd.f32 %v1850, %v2007
        %v2127 = vadd.f32 %v1851, %v2009
        %v2128 = vadd.f32 %v1852, %v2010
        %v2129 = vadd.f32 %v1853, %v2012
        %v2130 = vadd.f32 %v1854, %v2014
        %v2131 = vadd.f32 %v1855, %v2015
        %v2132 = vadd.f32 %v1856, %v2017
        %v2133 = vadd.f32 %v1857, %v2019
        %v2134 = vadd.f32 %v1858, %v2020
        %v2135 = vadd.f32 %v1859, %v2022
        %v2136 = vadd.f32 %v1860, %v2024
        %v2137 = vadd.f32 %v1861, %v2025
        %v2138 = vadd.f32 %v1862, %v2027
        %v2139 = vadd.f32 %v1863, %v2029
        %v2140 = vadd.f32 %v1864, %v2030
        %v2141 = vadd.f32 %v1865, %v2032
        %v2142 = vadd.f32 %v1866, %v2034
        %v2143 = vadd.f32 %v1867, %v2035
        %v2144 = vadd.f32 %v1868, %v2037
        %v2145 = vadd.f32 %v1869, %v2039
        %v2146 = vadd.f32 %v1870, %v2040
        %v2147 = vadd.f32 %v1871, %v2042
        %v2148 = vadd.f32 %v1872, %v2044
        %v2149 = vadd.f32 %v1873, %v2045
        %v2150 = vadd.f32 %v1874, %v2047
        %v2151 = vadd.f32 %v1875, %v2049
        %v2152 = vadd.f32 %v1876, %v2050
        %v2153 = vadd.f32 %v1877, %v2052
        %v2154 = vadd.f32 %v1878, %v2054
        %v2155 = vadd.f32 %v1879, %v2055
        %v2156 = vadd.f32 %v1880, %v2057
        %v2157 = vadd.f32 %v1881, %v2059
        %v2158 = vadd.f32 %v1882, %v2060
        %v2159 = vadd.f32 %v1883, %v2062
        %v2160 = vadd.f32 %v1884, %v2064
        %v2161 = vadd.f32 %v1573, %v2113
        %v2162 = vadd.f32 %v1574, %v2114
        %v2163 = vadd.f32 %v1575, %v2115
        %v2164 = vadd.f32 %v1576, %v2116
        %v2165 = vadd.f32 %v1577, %v2117
        %v2166 = vadd.f32 %v1578, %v2118
        %v2167 = vadd.f32 %v1579, %v2119
        %v2168 = vadd.f32 %v1580, %v2120
        %v2169 = vadd.f32 %v1581, %v2121
        %v2170 = vadd.f32 %v1582, %v2122
        %v2171 = vadd.f32 %v1583, %v2123
        %v2172 = vadd.f32 %v1584, %v2124
        %v2173 = vadd.f32 %v1585, %v2125
        %v2174 = vadd.f32 %v1586, %v2126
        %v2175 = vadd.f32 %v1587, %v2127
        %v2176 = vadd.f32 %v1588, %v2128
        %v2177 = vadd.f32 %v1589, %v2129
        %v2178 = vadd.f32 %v1590, %v2130
        %v2179 = vadd.f32 %v1591, %v2131
        %v2180 = vadd.f32 %v1592, %v2132
        %v2181 = vadd.f32 %v1593, %v2133
        %v2182 = vadd.f32 %v1594, %v2134
        %v2183 = vadd.f32 %v1595, %v2135
        %v2184 = vadd.f32 %v1596, %v2136
        %v2185 = vadd.f32 %v1597, %v2137
        %v2186 = vadd.f32 %v1598, %v2138
        %v2187 = vadd.f32 %v1599, %v2139
        %v2188 = vadd.f32 %v1600, %v2140
        %v2189 = vadd.f32 %v1601, %v2141
        %v2190 = vadd.f32 %v1602, %v2142
        %v2191 = vadd.f32 %v1603, %v2143
        %v2192 = vadd.f32 %v1604, %v2144
        %v2193 = vadd.f32 %v1605, %v2145
        %v2194 = vadd.f32 %v1606, %v2146
        %v2195 = vadd.f32 %v1607, %v2147
        %v2196 = vadd.f32 %v1608, %v2148
        %v2197 = vadd.f32 %v1609, %v2149
        %v2198 = vadd.f32 %v1610, %v2150
        %v2199 = vadd.f32 %v1611, %v2151
        %v2200 = vadd.f32 %v1612, %v2152
        %v2201 = vadd.f32 %v1613, %v2153
        %v2202 = vadd.f32 %v1614, %v2154
        %v2203 = vadd.f32 %v1615, %v2155
        %v2204 = vadd.f32 %v1616, %v2156
        %v2205 = vadd.f32 %v1617, %v2157
        %v2206 = vadd.f32 %v1618, %v2158
        %v2207 = vadd.f32 %v1619, %v2159
        %v2208 = vadd.f32 %v1620, %v2160
        %v2209 = vpack.c.bf16 %v2162, %v2161
        %v2210 = vpack.c.bf16 %v2163, %v2163
        %v2211 = vpack.c.bf16 %v2165, %v2164
        %v2212 = vpack.c.bf16 %v2166, %v2166
        %v2213 = vpack.c.bf16 %v2168, %v2167
        %v2214 = vpack.c.bf16 %v2169, %v2169
        %v2215 = vpack.c.bf16 %v2171, %v2170
        %v2216 = vpack.c.bf16 %v2172, %v2172
        %v2217 = vpack.c.bf16 %v2174, %v2173
        %v2218 = vpack.c.bf16 %v2175, %v2175
        %v2219 = vpack.c.bf16 %v2177, %v2176
        %v2220 = vpack.c.bf16 %v2178, %v2178
        %v2221 = vpack.c.bf16 %v2180, %v2179
        %v2222 = vpack.c.bf16 %v2181, %v2181
        %v2223 = vpack.c.bf16 %v2183, %v2182
        %v2224 = vpack.c.bf16 %v2184, %v2184
        %v2225 = vpack.c.bf16 %v2186, %v2185
        %v2226 = vpack.c.bf16 %v2187, %v2187
        %v2227 = vpack.c.bf16 %v2189, %v2188
        %v2228 = vpack.c.bf16 %v2190, %v2190
        %v2229 = vpack.c.bf16 %v2192, %v2191
        %v2230 = vpack.c.bf16 %v2193, %v2193
        %v2231 = vpack.c.bf16 %v2195, %v2194
        %v2232 = vpack.c.bf16 %v2196, %v2196
        %v2233 = vpack.c.bf16 %v2198, %v2197
        %v2234 = vpack.c.bf16 %v2199, %v2199
        %v2235 = vpack.c.bf16 %v2201, %v2200
        %v2236 = vpack.c.bf16 %v2202, %v2202
        %v2237 = vpack.c.bf16 %v2204, %v2203
        %v2238 = vpack.c.bf16 %v2205, %v2205
        %v2239 = vpack.c.bf16 %v2207, %v2206
        %v2240 = vpack.c.bf16 %v2208, %v2208
        %v2273 = vunpack.c.l.b16 %v2209
        %v2274 = vunpack.c.h.b16 %v2209
        %v2275 = vunpack.c.l.b16 %v2210
        %v2276 = vunpack.c.l.b16 %v2211
        %v2277 = vunpack.c.h.b16 %v2211
        %v2278 = vunpack.c.l.b16 %v2212
        %v2279 = vunpack.c.l.b16 %v2213
        %v2280 = vunpack.c.h.b16 %v2213
        %v2281 = vunpack.c.l.b16 %v2214
        %v2282 = vunpack.c.l.b16 %v2215
        %v2283 = vunpack.c.h.b16 %v2215
        %v2284 = vunpack.c.l.b16 %v2216
        %v2285 = vunpack.c.l.b16 %v2217
        %v2286 = vunpack.c.h.b16 %v2217
        %v2287 = vunpack.c.l.b16 %v2218
        %v2288 = vunpack.c.l.b16 %v2219
        %v2289 = vunpack.c.h.b16 %v2219
        %v2290 = vunpack.c.l.b16 %v2220
        %v2291 = vunpack.c.l.b16 %v2221
        %v2292 = vunpack.c.h.b16 %v2221
        %v2293 = vunpack.c.l.b16 %v2222
        %v2294 = vunpack.c.l.b16 %v2223
        %v2295 = vunpack.c.h.b16 %v2223
        %v2296 = vunpack.c.l.b16 %v2224
        %v2297 = vunpack.c.l.b16 %v2225
        %v2298 = vunpack.c.h.b16 %v2225
        %v2299 = vunpack.c.l.b16 %v2226
        %v2300 = vunpack.c.l.b16 %v2227
        %v2301 = vunpack.c.h.b16 %v2227
        %v2302 = vunpack.c.l.b16 %v2228
        %v2303 = vunpack.c.l.b16 %v2229
        %v2304 = vunpack.c.h.b16 %v2229
        %v2305 = vunpack.c.l.b16 %v2230
        %v2306 = vunpack.c.l.b16 %v2231
        %v2307 = vunpack.c.h.b16 %v2231
        %v2308 = vunpack.c.l.b16 %v2232
        %v2309 = vunpack.c.l.b16 %v2233
        %v2310 = vunpack.c.h.b16 %v2233
        %v2311 = vunpack.c.l.b16 %v2234
        %v2312 = vunpack.c.l.b16 %v2235
        %v2313 = vunpack.c.h.b16 %v2235
        %v2314 = vunpack.c.l.b16 %v2236
        %v2315 = vunpack.c.l.b16 %v2237
        %v2316 = vunpack.c.h.b16 %v2237
        %v2317 = vunpack.c.l.b16 %v2238
        %v2318 = vunpack.c.l.b16 %v2239
        %v2319 = vunpack.c.h.b16 %v2239
        %v2320 = vunpack.c.l.b16 %v2240
        %v2321 = vpack.c.b16 %v2273, %v2273
        %v2322 = vpack.c.b16 %v2274, %v2274
        %v2323 = vpack.c.b16 %v2275, %v2275
        %v2324 = vpack.c.b16 %v2276, %v2276
        %v2325 = vpack.c.b16 %v2277, %v2277
        %v2326 = vpack.c.b16 %v2278, %v2278
        %v2327 = vpack.c.b16 %v2279, %v2279
        %v2328 = vpack.c.b16 %v2280, %v2280
        %v2329 = vpack.c.b16 %v2281, %v2281
        %v2330 = vpack.c.b16 %v2282, %v2282
        %v2331 = vpack.c.b16 %v2283, %v2283
        %v2332 = vpack.c.b16 %v2284, %v2284
        %v2333 = vpack.c.b16 %v2285, %v2285
        %v2334 = vpack.c.b16 %v2286, %v2286
        %v2335 = vpack.c.b16 %v2287, %v2287
        %v2336 = vpack.c.b16 %v2288, %v2288
        %v2337 = vpack.c.b16 %v2289, %v2289
        %v2338 = vpack.c.b16 %v2290, %v2290
        %v2339 = vpack.c.b16 %v2291, %v2291
        %v2340 = vpack.c.b16 %v2292, %v2292
        %v2341 = vpack.c.b16 %v2293, %v2293
        %v2342 = vpack.c.b16 %v2294, %v2294
        %v2343 = vpack.c.b16 %v2295, %v2295
        %v2344 = vpack.c.b16 %v2296, %v2296
        %v2345 = vpack.c.b16 %v2297, %v2297
        %v2346 = vpack.c.b16 %v2298, %v2298
        %v2347 = vpack.c.b16 %v2299, %v2299
        %v2348 = vpack.c.b16 %v2300, %v2300
        %v2349 = vpack.c.b16 %v2301, %v2301
        %v2350 = vpack.c.b16 %v2302, %v2302
        %v2351 = vpack.c.b16 %v2303, %v2303
        %v2352 = vpack.c.b16 %v2304, %v2304
        %v2353 = vpack.c.b16 %v2305, %v2305
        %v2354 = vpack.c.b16 %v2306, %v2306
        %v2355 = vpack.c.b16 %v2307, %v2307
        %v2356 = vpack.c.b16 %v2308, %v2308
        %v2357 = vpack.c.b16 %v2309, %v2309
        %v2358 = vpack.c.b16 %v2310, %v2310
        %v2359 = vpack.c.b16 %v2311, %v2311
        %v2360 = vpack.c.b16 %v2312, %v2312
        %v2361 = vpack.c.b16 %v2313, %v2313
        %v2362 = vpack.c.b16 %v2314, %v2314
        %v2363 = vpack.c.b16 %v2315, %v2315
        %v2364 = vpack.c.b16 %v2316, %v2316
        %v2365 = vpack.c.b16 %v2317, %v2317
        %v2366 = vpack.c.b16 %v2318, %v2318
        %v2367 = vpack.c.b16 %v2319, %v2319
        %v2368 = vpack.c.b16 %v2320, %v2320
        %vm2369 = vsmask.f32 256
        %vm2370 = vsmask.f32 4368
        %vm2371 = vmor %vm2369, %vm2370
        %v2373 = vshrl.u32 %v2321, 16
        %v2375 = vrot.slane %v2373, 7
        %v2376 = vrot.slane %v2375, 4
        %v2378 = vshrl.u32 %v2322, 16
        %v2380 = vrot.slane %v2378, 7
        %v2381 = vshll.u32 %v2322, 16
        %v2383 = vor.u32 %v2380, %v2381
        %v2384 = vsel %vm2371, %v2376, %v2383
        %v2385 = vrot.slane %v2380, 4
        %v2387 = vshrl.u32 %v2323, 16
        %v2389 = vrot.slane %v2387, 7
        %v2390 = vshll.u32 %v2323, 16
        %v2392 = vor.u32 %v2389, %v2390
        %v2393 = vsel %vm2371, %v2385, %v2392
        %v2395 = vshrl.u32 %v2324, 16
        %v2397 = vrot.slane %v2395, 7
        %v2398 = vrot.slane %v2397, 4
        %v2400 = vshrl.u32 %v2325, 16
        %v2402 = vrot.slane %v2400, 7
        %v2403 = vshll.u32 %v2325, 16
        %v2405 = vor.u32 %v2402, %v2403
        %v2406 = vsel %vm2371, %v2398, %v2405
        %v2407 = vrot.slane %v2402, 4
        %v2409 = vshrl.u32 %v2326, 16
        %v2411 = vrot.slane %v2409, 7
        %v2412 = vshll.u32 %v2326, 16
        %v2414 = vor.u32 %v2411, %v2412
        %v2415 = vsel %vm2371, %v2407, %v2414
        %v2417 = vshrl.u32 %v2327, 16
        %v2419 = vrot.slane %v2417, 7
        %v2420 = vrot.slane %v2419, 4
        %v2422 = vshrl.u32 %v2328, 16
        %v2424 = vrot.slane %v2422, 7
        %v2425 = vshll.u32 %v2328, 16
        %v2427 = vor.u32 %v2424, %v2425
        %v2428 = vsel %vm2371, %v2420, %v2427
        %v2429 = vrot.slane %v2424, 4
        %v2431 = vshrl.u32 %v2329, 16
        %v2433 = vrot.slane %v2431, 7
        %v2434 = vshll.u32 %v2329, 16
        %v2436 = vor.u32 %v2433, %v2434
        %v2437 = vsel %vm2371, %v2429, %v2436
        %v2439 = vshrl.u32 %v2330, 16
        %v2441 = vrot.slane %v2439, 7
        %v2442 = vrot.slane %v2441, 4
        %v2444 = vshrl.u32 %v2331, 16
        %v2446 = vrot.slane %v2444, 7
        %v2447 = vshll.u32 %v2331, 16
        %v2449 = vor.u32 %v2446, %v2447
        %v2450 = vsel %vm2371, %v2442, %v2449
        %v2451 = vrot.slane %v2446, 4
        %v2453 = vshrl.u32 %v2332, 16
        %v2455 = vrot.slane %v2453, 7
        %v2456 = vshll.u32 %v2332, 16
        %v2458 = vor.u32 %v2455, %v2456
        %v2459 = vsel %vm2371, %v2451, %v2458
        %v2461 = vshrl.u32 %v2333, 16
        %v2463 = vrot.slane %v2461, 7
        %v2464 = vrot.slane %v2463, 4
        %v2466 = vshrl.u32 %v2334, 16
        %v2468 = vrot.slane %v2466, 7
        %v2469 = vshll.u32 %v2334, 16
        %v2471 = vor.u32 %v2468, %v2469
        %v2472 = vsel %vm2371, %v2464, %v2471
        %v2473 = vrot.slane %v2468, 4
        %v2475 = vshrl.u32 %v2335, 16
        %v2477 = vrot.slane %v2475, 7
        %v2478 = vshll.u32 %v2335, 16
        %v2480 = vor.u32 %v2477, %v2478
        %v2481 = vsel %vm2371, %v2473, %v2480
        %v2483 = vshrl.u32 %v2336, 16
        %v2485 = vrot.slane %v2483, 7
        %v2486 = vrot.slane %v2485, 4
        %v2488 = vshrl.u32 %v2337, 16
        %v2490 = vrot.slane %v2488, 7
        %v2491 = vshll.u32 %v2337, 16
        %v2493 = vor.u32 %v2490, %v2491
        %v2494 = vsel %vm2371, %v2486, %v2493
        %v2495 = vrot.slane %v2490, 4
        %v2497 = vshrl.u32 %v2338, 16
        %v2499 = vrot.slane %v2497, 7
        %v2500 = vshll.u32 %v2338, 16
        %v2502 = vor.u32 %v2499, %v2500
        %v2503 = vsel %vm2371, %v2495, %v2502
        %v2505 = vshrl.u32 %v2339, 16
        %v2507 = vrot.slane %v2505, 7
        %v2508 = vrot.slane %v2507, 4
        %v2510 = vshrl.u32 %v2340, 16
        %v2512 = vrot.slane %v2510, 7
        %v2513 = vshll.u32 %v2340, 16
        %v2515 = vor.u32 %v2512, %v2513
        %v2516 = vsel %vm2371, %v2508, %v2515
        %v2517 = vrot.slane %v2512, 4
        %v2519 = vshrl.u32 %v2341, 16
        %v2521 = vrot.slane %v2519, 7
        %v2522 = vshll.u32 %v2341, 16
        %v2524 = vor.u32 %v2521, %v2522
        %v2525 = vsel %vm2371, %v2517, %v2524
        %v2527 = vshrl.u32 %v2342, 16
        %v2529 = vrot.slane %v2527, 7
        %v2530 = vrot.slane %v2529, 4
        %v2532 = vshrl.u32 %v2343, 16
        %v2534 = vrot.slane %v2532, 7
        %v2535 = vshll.u32 %v2343, 16
        %v2537 = vor.u32 %v2534, %v2535
        %v2538 = vsel %vm2371, %v2530, %v2537
        %v2539 = vrot.slane %v2534, 4
        %v2541 = vshrl.u32 %v2344, 16
        %v2543 = vrot.slane %v2541, 7
        %v2544 = vshll.u32 %v2344, 16
        %v2546 = vor.u32 %v2543, %v2544
        %v2547 = vsel %vm2371, %v2539, %v2546
        %v2549 = vshrl.u32 %v2345, 16
        %v2551 = vrot.slane %v2549, 7
        %v2552 = vrot.slane %v2551, 4
        %v2554 = vshrl.u32 %v2346, 16
        %v2556 = vrot.slane %v2554, 7
        %v2557 = vshll.u32 %v2346, 16
        %v2559 = vor.u32 %v2556, %v2557
        %v2560 = vsel %vm2371, %v2552, %v2559
        %v2561 = vrot.slane %v2556, 4
        %v2563 = vshrl.u32 %v2347, 16
        %v2565 = vrot.slane %v2563, 7
        %v2566 = vshll.u32 %v2347, 16
        %v2568 = vor.u32 %v2565, %v2566
        %v2569 = vsel %vm2371, %v2561, %v2568
        %v2571 = vshrl.u32 %v2348, 16
        %v2573 = vrot.slane %v2571, 7
        %v2574 = vrot.slane %v2573, 4
        %v2576 = vshrl.u32 %v2349, 16
        %v2578 = vrot.slane %v2576, 7
        %v2579 = vshll.u32 %v2349, 16
        %v2581 = vor.u32 %v2578, %v2579
        %v2582 = vsel %vm2371, %v2574, %v2581
        %v2583 = vrot.slane %v2578, 4
        %v2585 = vshrl.u32 %v2350, 16
        %v2587 = vrot.slane %v2585, 7
        %v2588 = vshll.u32 %v2350, 16
        %v2590 = vor.u32 %v2587, %v2588
        %v2591 = vsel %vm2371, %v2583, %v2590
        %v2593 = vshrl.u32 %v2351, 16
        %v2595 = vrot.slane %v2593, 7
        %v2596 = vrot.slane %v2595, 4
        %v2598 = vshrl.u32 %v2352, 16
        %v2600 = vrot.slane %v2598, 7
        %v2601 = vshll.u32 %v2352, 16
        %v2603 = vor.u32 %v2600, %v2601
        %v2604 = vsel %vm2371, %v2596, %v2603
        %v2605 = vrot.slane %v2600, 4
        %v2607 = vshrl.u32 %v2353, 16
        %v2609 = vrot.slane %v2607, 7
        %v2610 = vshll.u32 %v2353, 16
        %v2612 = vor.u32 %v2609, %v2610
        %v2613 = vsel %vm2371, %v2605, %v2612
        %v2615 = vshrl.u32 %v2354, 16
        %v2617 = vrot.slane %v2615, 7
        %v2618 = vrot.slane %v2617, 4
        %v2620 = vshrl.u32 %v2355, 16
        %v2622 = vrot.slane %v2620, 7
        %v2623 = vshll.u32 %v2355, 16
        %v2625 = vor.u32 %v2622, %v2623
        %v2626 = vsel %vm2371, %v2618, %v2625
        %v2627 = vrot.slane %v2622, 4
        %v2629 = vshrl.u32 %v2356, 16
        %v2631 = vrot.slane %v2629, 7
        %v2632 = vshll.u32 %v2356, 16
        %v2634 = vor.u32 %v2631, %v2632
        %v2635 = vsel %vm2371, %v2627, %v2634
        %v2637 = vshrl.u32 %v2357, 16
        %v2639 = vrot.slane %v2637, 7
        %v2640 = vrot.slane %v2639, 4
        %v2642 = vshrl.u32 %v2358, 16
        %v2644 = vrot.slane %v2642, 7
        %v2645 = vshll.u32 %v2358, 16
        %v2647 = vor.u32 %v2644, %v2645
        %v2648 = vsel %vm2371, %v2640, %v2647
        %v2649 = vrot.slane %v2644, 4
        %v2651 = vshrl.u32 %v2359, 16
        %v2653 = vrot.slane %v2651, 7
        %v2654 = vshll.u32 %v2359, 16
        %v2656 = vor.u32 %v2653, %v2654
        %v2657 = vsel %vm2371, %v2649, %v2656
        %v2659 = vshrl.u32 %v2360, 16
        %v2661 = vrot.slane %v2659, 7
        %v2662 = vrot.slane %v2661, 4
        %v2664 = vshrl.u32 %v2361, 16
        %v2666 = vrot.slane %v2664, 7
        %v2667 = vshll.u32 %v2361, 16
        %v2669 = vor.u32 %v2666, %v2667
        %v2670 = vsel %vm2371, %v2662, %v2669
        %v2671 = vrot.slane %v2666, 4
        %v2673 = vshrl.u32 %v2362, 16
        %v2675 = vrot.slane %v2673, 7
        %v2676 = vshll.u32 %v2362, 16
        %v2678 = vor.u32 %v2675, %v2676
        %v2679 = vsel %vm2371, %v2671, %v2678
        %v2681 = vshrl.u32 %v2363, 16
        %v2683 = vrot.slane %v2681, 7
        %v2684 = vrot.slane %v2683, 4
        %v2686 = vshrl.u32 %v2364, 16
        %v2688 = vrot.slane %v2686, 7
        %v2689 = vshll.u32 %v2364, 16
        %v2691 = vor.u32 %v2688, %v2689
        %v2692 = vsel %vm2371, %v2684, %v2691
        %v2693 = vrot.slane %v2688, 4
        %v2695 = vshrl.u32 %v2365, 16
        %v2697 = vrot.slane %v2695, 7
        %v2698 = vshll.u32 %v2365, 16
        %v2700 = vor.u32 %v2697, %v2698
        %v2701 = vsel %vm2371, %v2693, %v2700
        %v2703 = vshrl.u32 %v2366, 16
        %v2705 = vrot.slane %v2703, 7
        %v2706 = vrot.slane %v2705, 4
        %v2708 = vshrl.u32 %v2367, 16
        %v2710 = vrot.slane %v2708, 7
        %v2711 = vshll.u32 %v2367, 16
        %v2713 = vor.u32 %v2710, %v2711
        %v2714 = vsel %vm2371, %v2706, %v2713
        %v2715 = vrot.slane %v2710, 4
        %v2717 = vshrl.u32 %v2368, 16
        %v2719 = vrot.slane %v2717, 7
        %v2720 = vshll.u32 %v2368, 16
        %v2722 = vor.u32 %v2719, %v2720
        %v2723 = vsel %vm2371, %v2715, %v2722
        %2756 = vst [vmem:[%s234] sm:$0xf] %v2384
        %2757 = vst [vmem:[%s234 + $0x4] sm:$0xf] %v2393
        %2758 = vst [vmem:[%s234 + $0x8] sm:$0xf] %v2406
        %2759 = vst [vmem:[%s234 + $0xc] sm:$0xf] %v2415
        %2760 = vst [vmem:[%s234 + $0x10] sm:$0xf] %v2428
        %2761 = vst [vmem:[%s234 + $0x14] sm:$0xf] %v2437
        %2762 = vst [vmem:[%s234 + $0x18] sm:$0xf] %v2450
        %2763 = vst [vmem:[%s234 + $0x1c] sm:$0xf] %v2459
        %2764 = vst [vmem:[%s234 + $0x20] sm:$0xf] %v2472
        %2765 = vst [vmem:[%s234 + $0x24] sm:$0xf] %v2481
        %2766 = vst [vmem:[%s234 + $0x28] sm:$0xf] %v2494
        %2767 = vst [vmem:[%s234 + $0x2c] sm:$0xf] %v2503
        %2768 = vst [vmem:[%s234 + $0x30] sm:$0xf] %v2516
        %2769 = vst [vmem:[%s234 + $0x34] sm:$0xf] %v2525
        %2770 = vst [vmem:[%s234 + $0x38] sm:$0xf] %v2538
        %2771 = vst [vmem:[%s234 + $0x3c] sm:$0xf] %v2547
        %2772 = vst [vmem:[%s234 + $0x40] sm:$0xf] %v2560
        %2773 = vst [vmem:[%s234 + $0x44] sm:$0xf] %v2569
        %2774 = vst [vmem:[%s234 + $0x48] sm:$0xf] %v2582
        %2775 = vst [vmem:[%s234 + $0x4c] sm:$0xf] %v2591
        %2776 = vst [vmem:[%s234 + $0x50] sm:$0xf] %v2604
        %2777 = vst [vmem:[%s234 + $0x54] sm:$0xf] %v2613
        %2778 = vst [vmem:[%s234 + $0x58] sm:$0xf] %v2626
        %2779 = vst [vmem:[%s234 + $0x5c] sm:$0xf] %v2635
        %2780 = vst [vmem:[%s234 + $0x60] sm:$0xf] %v2648
        %2781 = vst [vmem:[%s234 + $0x64] sm:$0xf] %v2657
        %2782 = vst [vmem:[%s234 + $0x68] sm:$0xf] %v2670
        %2783 = vst [vmem:[%s234 + $0x6c] sm:$0xf] %v2679
        %2784 = vst [vmem:[%s234 + $0x70] sm:$0xf] %v2692
        %2785 = vst [vmem:[%s234 + $0x74] sm:$0xf] %v2701
        %2786 = vst [vmem:[%s234 + $0x78] sm:$0xf] %v2714
        %2787 = vst [vmem:[%s234 + $0x7c] sm:$0xf] %v2723
        %v2788 = vunpack.c.l.bf16 %v2209
        %v2789 = vunpack.c.h.bf16 %v2209
        %v2790 = vunpack.c.l.bf16 %v2210
        %v2791 = vunpack.c.l.bf16 %v2211
        %v2792 = vunpack.c.h.bf16 %v2211
        %v2793 = vunpack.c.l.bf16 %v2212
        %v2794 = vunpack.c.l.bf16 %v2213
        %v2795 = vunpack.c.h.bf16 %v2213
        %v2796 = vunpack.c.l.bf16 %v2214
        %v2797 = vunpack.c.l.bf16 %v2215
        %v2798 = vunpack.c.h.bf16 %v2215
        %v2799 = vunpack.c.l.bf16 %v2216
        %v2800 = vunpack.c.l.bf16 %v2217
        %v2801 = vunpack.c.h.bf16 %v2217
        %v2802 = vunpack.c.l.bf16 %v2218
        %v2803 = vunpack.c.l.bf16 %v2219
        %v2804 = vunpack.c.h.bf16 %v2219
        %v2805 = vunpack.c.l.bf16 %v2220
        %v2806 = vunpack.c.l.bf16 %v2221
        %v2807 = vunpack.c.h.bf16 %v2221
        %v2808 = vunpack.c.l.bf16 %v2222
        %v2809 = vunpack.c.l.bf16 %v2223
        %v2810 = vunpack.c.h.bf16 %v2223
        %v2811 = vunpack.c.l.bf16 %v2224
        %v2812 = vunpack.c.l.bf16 %v2225
        %v2813 = vunpack.c.h.bf16 %v2225
        %v2814 = vunpack.c.l.bf16 %v2226
        %v2815 = vunpack.c.l.bf16 %v2227
        %v2816 = vunpack.c.h.bf16 %v2227
        %v2817 = vunpack.c.l.bf16 %v2228
        %v2818 = vunpack.c.l.bf16 %v2229
        %v2819 = vunpack.c.h.bf16 %v2229
        %v2820 = vunpack.c.l.bf16 %v2230
        %v2821 = vunpack.c.l.bf16 %v2231
        %v2822 = vunpack.c.h.bf16 %v2231
        %v2823 = vunpack.c.l.bf16 %v2232
        %v2824 = vunpack.c.l.bf16 %v2233
        %v2825 = vunpack.c.h.bf16 %v2233
        %v2826 = vunpack.c.l.bf16 %v2234
        %v2827 = vunpack.c.l.bf16 %v2235
        %v2828 = vunpack.c.h.bf16 %v2235
        %v2829 = vunpack.c.l.bf16 %v2236
        %v2830 = vunpack.c.l.bf16 %v2237
        %v2831 = vunpack.c.h.bf16 %v2237
        %v2832 = vunpack.c.l.bf16 %v2238
        %v2833 = vunpack.c.l.bf16 %v2239
        %v2834 = vunpack.c.h.bf16 %v2239
        %v2835 = vunpack.c.l.bf16 %v2240
        %vm2884 = vcmask 1040384
        %v2885 = vrot.slane %v2788, 7
        %v2886 = vrot.slane %v2789, 7
        %v2887 = vsel %vm2884, %v2885, %v2886
        %v2888 = vrot.slane %v2790, 7
        %v2889 = vsel %vm2884, %v2886, %v2888
        %v2890 = vrot.slane %v2791, 7
        %v2891 = vrot.slane %v2792, 7
        %v2892 = vsel %vm2884, %v2890, %v2891
        %v2893 = vrot.slane %v2793, 7
        %v2894 = vsel %vm2884, %v2891, %v2893
        %v2895 = vrot.slane %v2794, 7
        %v2896 = vrot.slane %v2795, 7
        %v2897 = vsel %vm2884, %v2895, %v2896
        %v2898 = vrot.slane %v2796, 7
        %v2899 = vsel %vm2884, %v2896, %v2898
        %v2900 = vrot.slane %v2797, 7
        %v2901 = vrot.slane %v2798, 7
        %v2902 = vsel %vm2884, %v2900, %v2901
        %v2903 = vrot.slane %v2799, 7
        %v2904 = vsel %vm2884, %v2901, %v2903
        %v2905 = vrot.slane %v2800, 7
        %v2906 = vrot.slane %v2801, 7
        %v2907 = vsel %vm2884, %v2905, %v2906
        %v2908 = vrot.slane %v2802, 7
        %v2909 = vsel %vm2884, %v2906, %v2908
        %v2910 = vrot.slane %v2803, 7
        %v2911 = vrot.slane %v2804, 7
        %v2912 = vsel %vm2884, %v2910, %v2911
        %v2913 = vrot.slane %v2805, 7
        %v2914 = vsel %vm2884, %v2911, %v2913
        %v2915 = vrot.slane %v2806, 7
        %v2916 = vrot.slane %v2807, 7
        %v2917 = vsel %vm2884, %v2915, %v2916
        %v2918 = vrot.slane %v2808, 7
        %v2919 = vsel %vm2884, %v2916, %v2918
        %v2920 = vrot.slane %v2809, 7
        %v2921 = vrot.slane %v2810, 7
        %v2922 = vsel %vm2884, %v2920, %v2921
        %v2923 = vrot.slane %v2811, 7
        %v2924 = vsel %vm2884, %v2921, %v2923
        %v2925 = vrot.slane %v2812, 7
        %v2926 = vrot.slane %v2813, 7
        %v2927 = vsel %vm2884, %v2925, %v2926
        %v2928 = vrot.slane %v2814, 7
        %v2929 = vsel %vm2884, %v2926, %v2928
        %v2930 = vrot.slane %v2815, 7
        %v2931 = vrot.slane %v2816, 7
        %v2932 = vsel %vm2884, %v2930, %v2931
        %v2933 = vrot.slane %v2817, 7
        %v2934 = vsel %vm2884, %v2931, %v2933
        %v2935 = vrot.slane %v2818, 7
        %v2936 = vrot.slane %v2819, 7
        %v2937 = vsel %vm2884, %v2935, %v2936
        %v2938 = vrot.slane %v2820, 7
        %v2939 = vsel %vm2884, %v2936, %v2938
        %v2940 = vrot.slane %v2821, 7
        %v2941 = vrot.slane %v2822, 7
        %v2942 = vsel %vm2884, %v2940, %v2941
        %v2943 = vrot.slane %v2823, 7
        %v2944 = vsel %vm2884, %v2941, %v2943
        %v2945 = vrot.slane %v2824, 7
        %v2946 = vrot.slane %v2825, 7
        %v2947 = vsel %vm2884, %v2945, %v2946
        %v2948 = vrot.slane %v2826, 7
        %v2949 = vsel %vm2884, %v2946, %v2948
        %v2950 = vrot.slane %v2827, 7
        %v2951 = vrot.slane %v2828, 7
        %v2952 = vsel %vm2884, %v2950, %v2951
        %v2953 = vrot.slane %v2829, 7
        %v2954 = vsel %vm2884, %v2951, %v2953
        %v2955 = vrot.slane %v2830, 7
        %v2956 = vrot.slane %v2831, 7
        %v2957 = vsel %vm2884, %v2955, %v2956
        %v2958 = vrot.slane %v2832, 7
        %v2959 = vsel %vm2884, %v2956, %v2958
        %v2960 = vrot.slane %v2833, 7
        %v2961 = vrot.slane %v2834, 7
        %v2962 = vsel %vm2884, %v2960, %v2961
        %v2963 = vrot.slane %v2835, 7
        %v2964 = vsel %vm2884, %v2961, %v2963
        %v2997 = vadd.f32 %v2887, %v2889
        %v2998 = vadd.f32 %v2997, %v2892
        %v2999 = vadd.f32 %v2998, %v2894
        %v3000 = vadd.f32 %v2999, %v2897
        %v3001 = vadd.f32 %v3000, %v2899
        %v3002 = vadd.f32 %v3001, %v2902
        %v3003 = vadd.f32 %v3002, %v2904
        %v3004 = vadd.f32 %v3003, %v2907
        %v3005 = vadd.f32 %v3004, %v2909
        %v3006 = vadd.f32 %v3005, %v2912
        %v3007 = vadd.f32 %v3006, %v2914
        %v3008 = vadd.f32 %v3007, %v2917
        %v3009 = vadd.f32 %v3008, %v2919
        %v3010 = vadd.f32 %v3009, %v2922
        %v3011 = vadd.f32 %v3010, %v2924
        %v3012 = vadd.f32 %v3011, %v2927
        %v3013 = vadd.f32 %v3012, %v2929
        %v3014 = vadd.f32 %v3013, %v2932
        %v3015 = vadd.f32 %v3014, %v2934
        %v3016 = vadd.f32 %v3015, %v2937
        %v3017 = vadd.f32 %v3016, %v2939
        %v3018 = vadd.f32 %v3017, %v2942
        %v3019 = vadd.f32 %v3018, %v2944
        %v3020 = vadd.f32 %v3019, %v2947
        %v3021 = vadd.f32 %v3020, %v2949
        %v3022 = vadd.f32 %v3021, %v2952
        %v3023 = vadd.f32 %v3022, %v2954
        %v3024 = vadd.f32 %v3023, %v2957
        %v3025 = vadd.f32 %v3024, %v2959
        %v3026 = vadd.f32 %v3025, %v2962
        %v3027 = vadd.f32 %v3026, %v2964
        %v3028 = vrot.slane %v3027, 4
        %v3029 = vadd.f32 %v3027, %v3028
        %v3030 = vrot.slane %v3029, 2
        %v3031 = vadd.f32 %v3029, %v3030
        %v3032 = vrot.slane %v3031, 1
        %v3033 = vadd.f32 %v3031, %v3032
        %3034 = vst [vmem:[%s240] sm:$0x1] %v3033
        %v3035 = vmul.f32 %v2788, %v2788
        %v3036 = vmul.f32 %v2789, %v2789
        %v3037 = vmul.f32 %v2790, %v2790
        %v3038 = vmul.f32 %v2791, %v2791
        %v3039 = vmul.f32 %v2792, %v2792
        %v3040 = vmul.f32 %v2793, %v2793
        %v3041 = vmul.f32 %v2794, %v2794
        %v3042 = vmul.f32 %v2795, %v2795
        %v3043 = vmul.f32 %v2796, %v2796
        %v3044 = vmul.f32 %v2797, %v2797
        %v3045 = vmul.f32 %v2798, %v2798
        %v3046 = vmul.f32 %v2799, %v2799
        %v3047 = vmul.f32 %v2800, %v2800
        %v3048 = vmul.f32 %v2801, %v2801
        %v3049 = vmul.f32 %v2802, %v2802
        %v3050 = vmul.f32 %v2803, %v2803
        %v3051 = vmul.f32 %v2804, %v2804
        %v3052 = vmul.f32 %v2805, %v2805
        %v3053 = vmul.f32 %v2806, %v2806
        %v3054 = vmul.f32 %v2807, %v2807
        %v3055 = vmul.f32 %v2808, %v2808
        %v3056 = vmul.f32 %v2809, %v2809
        %v3057 = vmul.f32 %v2810, %v2810
        %v3058 = vmul.f32 %v2811, %v2811
        %v3059 = vmul.f32 %v2812, %v2812
        %v3060 = vmul.f32 %v2813, %v2813
        %v3061 = vmul.f32 %v2814, %v2814
        %v3062 = vmul.f32 %v2815, %v2815
        %v3063 = vmul.f32 %v2816, %v2816
        %v3064 = vmul.f32 %v2817, %v2817
        %v3065 = vmul.f32 %v2818, %v2818
        %v3066 = vmul.f32 %v2819, %v2819
        %v3067 = vmul.f32 %v2820, %v2820
        %v3068 = vmul.f32 %v2821, %v2821
        %v3069 = vmul.f32 %v2822, %v2822
        %v3070 = vmul.f32 %v2823, %v2823
        %v3071 = vmul.f32 %v2824, %v2824
        %v3072 = vmul.f32 %v2825, %v2825
        %v3073 = vmul.f32 %v2826, %v2826
        %v3074 = vmul.f32 %v2827, %v2827
        %v3075 = vmul.f32 %v2828, %v2828
        %v3076 = vmul.f32 %v2829, %v2829
        %v3077 = vmul.f32 %v2830, %v2830
        %v3078 = vmul.f32 %v2831, %v2831
        %v3079 = vmul.f32 %v2832, %v2832
        %v3080 = vmul.f32 %v2833, %v2833
        %v3081 = vmul.f32 %v2834, %v2834
        %v3082 = vmul.f32 %v2835, %v2835
        %v3131 = vrot.slane %v3035, 7
        %v3132 = vrot.slane %v3036, 7
        %v3133 = vsel %vm2884, %v3131, %v3132
        %v3134 = vrot.slane %v3037, 7
        %v3135 = vsel %vm2884, %v3132, %v3134
        %v3136 = vrot.slane %v3038, 7
        %v3137 = vrot.slane %v3039, 7
        %v3138 = vsel %vm2884, %v3136, %v3137
        %v3139 = vrot.slane %v3040, 7
        %v3140 = vsel %vm2884, %v3137, %v3139
        %v3141 = vrot.slane %v3041, 7
        %v3142 = vrot.slane %v3042, 7
        %v3143 = vsel %vm2884, %v3141, %v3142
        %v3144 = vrot.slane %v3043, 7
        %v3145 = vsel %vm2884, %v3142, %v3144
        %v3146 = vrot.slane %v3044, 7
        %v3147 = vrot.slane %v3045, 7
        %v3148 = vsel %vm2884, %v3146, %v3147
        %v3149 = vrot.slane %v3046, 7
        %v3150 = vsel %vm2884, %v3147, %v3149
        %v3151 = vrot.slane %v3047, 7
        %v3152 = vrot.slane %v3048, 7
        %v3153 = vsel %vm2884, %v3151, %v3152
        %v3154 = vrot.slane %v3049, 7
        %v3155 = vsel %vm2884, %v3152, %v3154
        %v3156 = vrot.slane %v3050, 7
        %v3157 = vrot.slane %v3051, 7
        %v3158 = vsel %vm2884, %v3156, %v3157
        %v3159 = vrot.slane %v3052, 7
        %v3160 = vsel %vm2884, %v3157, %v3159
        %v3161 = vrot.slane %v3053, 7
        %v3162 = vrot.slane %v3054, 7
        %v3163 = vsel %vm2884, %v3161, %v3162
        %v3164 = vrot.slane %v3055, 7
        %v3165 = vsel %vm2884, %v3162, %v3164
        %v3166 = vrot.slane %v3056, 7
        %v3167 = vrot.slane %v3057, 7
        %v3168 = vsel %vm2884, %v3166, %v3167
        %v3169 = vrot.slane %v3058, 7
        %v3170 = vsel %vm2884, %v3167, %v3169
        %v3171 = vrot.slane %v3059, 7
        %v3172 = vrot.slane %v3060, 7
        %v3173 = vsel %vm2884, %v3171, %v3172
        %v3174 = vrot.slane %v3061, 7
        %v3175 = vsel %vm2884, %v3172, %v3174
        %v3176 = vrot.slane %v3062, 7
        %v3177 = vrot.slane %v3063, 7
        %v3178 = vsel %vm2884, %v3176, %v3177
        %v3179 = vrot.slane %v3064, 7
        %v3180 = vsel %vm2884, %v3177, %v3179
        %v3181 = vrot.slane %v3065, 7
        %v3182 = vrot.slane %v3066, 7
        %v3183 = vsel %vm2884, %v3181, %v3182
        %v3184 = vrot.slane %v3067, 7
        %v3185 = vsel %vm2884, %v3182, %v3184
        %v3186 = vrot.slane %v3068, 7
        %v3187 = vrot.slane %v3069, 7
        %v3188 = vsel %vm2884, %v3186, %v3187
        %v3189 = vrot.slane %v3070, 7
        %v3190 = vsel %vm2884, %v3187, %v3189
        %v3191 = vrot.slane %v3071, 7
        %v3192 = vrot.slane %v3072, 7
        %v3193 = vsel %vm2884, %v3191, %v3192
        %v3194 = vrot.slane %v3073, 7
        %v3195 = vsel %vm2884, %v3192, %v3194
        %v3196 = vrot.slane %v3074, 7
        %v3197 = vrot.slane %v3075, 7
        %v3198 = vsel %vm2884, %v3196, %v3197
        %v3199 = vrot.slane %v3076, 7
        %v3200 = vsel %vm2884, %v3197, %v3199
        %v3201 = vrot.slane %v3077, 7
        %v3202 = vrot.slane %v3078, 7
        %v3203 = vsel %vm2884, %v3201, %v3202
        %v3204 = vrot.slane %v3079, 7
        %v3205 = vsel %vm2884, %v3202, %v3204
        %v3206 = vrot.slane %v3080, 7
        %v3207 = vrot.slane %v3081, 7
        %v3208 = vsel %vm2884, %v3206, %v3207
        %v3209 = vrot.slane %v3082, 7
        %v3210 = vsel %vm2884, %v3207, %v3209
        %v3243 = vadd.f32 %v3133, %v3135
        %v3244 = vadd.f32 %v3243, %v3138
        %v3245 = vadd.f32 %v3244, %v3140
        %v3246 = vadd.f32 %v3245, %v3143
        %v3247 = vadd.f32 %v3246, %v3145
        %v3248 = vadd.f32 %v3247, %v3148
        %v3249 = vadd.f32 %v3248, %v3150
        %v3250 = vadd.f32 %v3249, %v3153
        %v3251 = vadd.f32 %v3250, %v3155
        %v3252 = vadd.f32 %v3251, %v3158
        %v3253 = vadd.f32 %v3252, %v3160
        %v3254 = vadd.f32 %v3253, %v3163
        %v3255 = vadd.f32 %v3254, %v3165
        %v3256 = vadd.f32 %v3255, %v3168
        %v3257 = vadd.f32 %v3256, %v3170
        %v3258 = vadd.f32 %v3257, %v3173
        %v3259 = vadd.f32 %v3258, %v3175
        %v3260 = vadd.f32 %v3259, %v3178
        %v3261 = vadd.f32 %v3260, %v3180
        %v3262 = vadd.f32 %v3261, %v3183
        %v3263 = vadd.f32 %v3262, %v3185
        %v3264 = vadd.f32 %v3263, %v3188
        %v3265 = vadd.f32 %v3264, %v3190
        %v3266 = vadd.f32 %v3265, %v3193
        %v3267 = vadd.f32 %v3266, %v3195
        %v3268 = vadd.f32 %v3267, %v3198
        %v3269 = vadd.f32 %v3268, %v3200
        %v3270 = vadd.f32 %v3269, %v3203
        %v3271 = vadd.f32 %v3270, %v3205
        %v3272 = vadd.f32 %v3271, %v3208
        %v3273 = vadd.f32 %v3272, %v3210
        %v3274 = vrot.slane %v3273, 4
        %v3275 = vadd.f32 %v3273, %v3274
        %v3276 = vrot.slane %v3275, 2
        %v3277 = vadd.f32 %v3275, %v3276
        %v3278 = vrot.slane %v3277, 1
        %v3279 = vadd.f32 %v3277, %v3278
        %3280 = vst [vmem:[%s246] sm:$0x1] %v3279
        %s3281 = sand.u32 %s81, 1
        %s3282 = scalar_lea.sflag [#allocation5], %s3281
        %s3283 = sand.u32 %s81, 1
        %s3284 = smul.addr %s3283, 128
        %s3285 = scalar_lea.vmem [#allocation8], %s3284
        %s3286 = sand.u32 %s26, 1
        %s3287 = scalar_lea.sflag [#allocation10], %s3286
        %s3288 = sand.u32 %s107, 1
        %s3289 = scalar_lea.vmem [#allocation9], %s3288
        %s3290 = sand.u32 %s26, 1
        %s3291 = scalar_lea.sflag [#allocation10], %s3290
        %s3292 = sand.u32 %s133, 1
        %s3293 = scalar_lea.vmem [#allocation11], %s3292
        // Predicated region
        $region37: #{tpu_custom_call.1} parent=27 // pred_check
          %p3294 = pneg %p91
        $region38: #{tpu_custom_call.1} parent=27 // pred_check_branch
          %3296 = sbr.rel (%p3294) target = $region40
        $region39: #{tpu_custom_call.1} parent=27 // pred_region
          %s3298 = ssub.s32 2048, 2048
          %3299 = vsyncadd %s3282, %s3298
          %s3300 = smul.addr %s26, 32
          %s3301 = smul.addr %s3300, 64
          %s3302 = scalar_lea.hbm %s2, %s3301
          %s3303 = sshll.u32 %s3285, 4
          %s3304 = int_to_ptr.vmem [resolvable:$true] %s3303
          %3309 = dma.vmem_to_hbm [thread:$0]  %s3304, 2048, %s3302, %s3282, 64, 64, 4
        $region40: #{tpu_custom_call.1} parent=27 // pred_fallthru
          _
        // Predicated region
        $region41: #{tpu_custom_call.1} parent=27 // pred_check
          %p3310 = pneg %p117
        $region42: #{tpu_custom_call.1} parent=27 // pred_check_branch
          %3312 = sbr.rel (%p3310) target = $region44
        $region43: #{tpu_custom_call.1} parent=27 // pred_region
          %s3314 = ssub.s32 16, 16
          %3315 = vsyncadd %s3287, %s3314
          %s3316 = smul.addr %s26, 16
          %s3317 = scalar_lea.hbm %s3, %s3316
          %s3319 = sshll.u32 %s3289, 4
          %s3320 = int_to_ptr.vmem [resolvable:$true] %s3319
          %3322 = dma.vmem_to_hbm [thread:$0]  %s3320, 16, %s3317, %s3287
        $region44: #{tpu_custom_call.1} parent=27 // pred_fallthru
          _
        // Predicated region
        $region45: #{tpu_custom_call.1} parent=27 // pred_check
          %p3323 = pneg %p143
        $region46: #{tpu_custom_call.1} parent=27 // pred_check_branch
          %3325 = sbr.rel (%p3323) target = $region48
        $region47: #{tpu_custom_call.1} parent=27 // pred_region
          %s3327 = ssub.s32 16, 16
          %3328 = vsyncadd %s3291, %s3327
          %s3329 = smul.addr %s26, 16
          %s3330 = scalar_lea.hbm %s4, %s3329
          %s3332 = sshll.u32 %s3293, 4
          %s3333 = int_to_ptr.vmem [resolvable:$true] %s3332
          %3335 = dma.vmem_to_hbm [thread:$0]  %s3333, 16, %s3330, %s3291
        $region48: #{tpu_custom_call.1} parent=27 // pred_fallthru
          _
      $region28: #{tpu_custom_call.1} parent=5 // pred_fallthru
        _
      %p3336 = scmp.le.s32.totalorder 2, %s21
      // Predicated region
      $region49: #{tpu_custom_call.1} parent=5 // pred_check
        %p3337 = pneg %p3336
      $region50: #{tpu_custom_call.1} parent=5 // pred_check_branch
        %3339 = sbr.rel (%p3337) target = $region52
      $region51: #{tpu_custom_call.1} parent=5 // pred_region
        %s3340 = ssub.s32 %s21, 2
        // Predicated region
        $region53: #{tpu_custom_call.1} parent=51 // pred_check
          %p3341 = pneg %p97
        $region54: #{tpu_custom_call.1} parent=51 // pred_check_branch
          %3343 = sbr.rel (%p3341) target = $region56
        $region55: #{tpu_custom_call.1} parent=51 // pred_region
          %s3344 = sand.u32 %s82, 1
          %s3345 = scalar_lea.sflag [#allocation5], %s3344
          %s3346 = sand.u32 %s82, 1
          %s3347 = smul.addr %s3346, 128
          %s3348 = scalar_lea.vmem [#allocation8], %s3347
          %3349 = dma.done %s3345, 2048
        $region56: #{tpu_custom_call.1} parent=51 // pred_fallthru
          _
        // Predicated region
        $region57: #{tpu_custom_call.1} parent=51 // pred_check
          %p3350 = pneg %p123
        $region58: #{tpu_custom_call.1} parent=51 // pred_check_branch
          %3352 = sbr.rel (%p3350) target = $region60
        $region59: #{tpu_custom_call.1} parent=51 // pred_region
          %s3353 = sand.u32 %s27, 1
          %s3354 = scalar_lea.sflag [#allocation10], %s3353
          %s3355 = sand.u32 %s108, 1
          %s3356 = scalar_lea.vmem [#allocation9], %s3355
          %3357 = dma.done %s3354, 16
        $region60: #{tpu_custom_call.1} parent=51 // pred_fallthru
          _
        // Predicated region
        $region61: #{tpu_custom_call.1} parent=51 // pred_check
          %p3358 = pneg %p149
        $region62: #{tpu_custom_call.1} parent=51 // pred_check_branch
          %3360 = sbr.rel (%p3358) target = $region64
        $region63: #{tpu_custom_call.1} parent=51 // pred_region
          %s3361 = sand.u32 %s27, 1
          %s3362 = scalar_lea.sflag [#allocation10], %s3361
          %s3363 = sand.u32 %s134, 1
          %s3364 = scalar_lea.vmem [#allocation11], %s3363
          %3365 = dma.done %s3362, 16
        $region64: #{tpu_custom_call.1} parent=51 // pred_fallthru
          _
      $region52: #{tpu_custom_call.1} parent=5 // pred_fallthru
        _
    $region6: #{tpu_custom_call.1} parent=1 // loop_footer
      %s25 = sadd.s32 1, %s21
    $region7: #{tpu_custom_call.1} parent=1 // loop_footer_branch
      %20 = sbr.rel target = $region3
    $region8: #{tpu_custom_call.1} parent=1 // loop_exit
      _
    %3366 = vsyncpa [#allocation4], 1
    %s3367 = scalar_lea.sflag [#allocation4], 1
    %3368 = vsyncpa %s3367, 1
    %3369 = vsyncpa [#allocation7], 1
    %3370 = vsyncpa [#allocation5], 1
    %s3371 = scalar_lea.sflag [#allocation5], 1
    %3372 = vsyncpa %s3371, 1
    %3373 = vsyncpa [#allocation10], 1
    %s3374 = scalar_lea.sflag [#allocation10], 1
    %3375 = vsyncpa %s3374, 1

</llo_original>
